<compile_context>
chip_gen: v7x
topology: tpu7x:2x2x1
jax: 0.10.0
libtpu: 0.0.40
codegen_flags: <defaults>
</compile_context>

<pallas_src>
import jax
import jax.numpy as jnp
from jax import lax
from jax.experimental import pallas as pl
from jax.experimental.pallas import tpu as pltpu


def _attention_kernel(q_kron_ref, q_conf_ref, kv_kron_ref, kv_t_ref,
                      wq_ref, wkv_ref, bq_ref, bkv_ref, gamma_ref, o_ref):
    bb, CD, N = q_kron_ref.shape            # batches-per-step, C*D, H*W

    # Parameters: loaded once, hoisted out of the (short, static) batch loop.
    wq = wq_ref[...]                        # (CD, CD)    kron(Wq, I_D)
    wkv = wkv_ref[...]                      # (2*CD, CD)  [kron(Wk,I_D); kron(Wv,I_D)]
    bq = bq_ref[...]                        # (CD, 1)
    bkv = bkv_ref[...]                      # (2*CD, 1)
    gamma = gamma_ref[0]                    # scalar from SMEM

    for b in range(bb):                     # static unroll, bb <= B (tiny)
        q_cd = q_kron_ref[b]                # (CD, N)
        x_cd = kv_kron_ref[b]               # (CD, N)

        # --- confidence = max_D(softmax_D(q)) = 1 / sum_d exp(q - max_d q) --
        # (exp(0) == 1 exactly, so this equals max-of-softmax bit-for-bit)
        q3 = q_conf_ref[b]                  # (C, D, N)
        qmax = jnp.max(q3, axis=1, keepdims=True)
        denom = jnp.sum(jnp.exp(q3 - qmax), axis=1)     # (C, N)
        conf = 1.0 / denom                              # (C, N)

        # --- 1x1 Conv3d projections: single K = C*D matmuls (kron-expanded) -
        pq = jnp.dot(wq, q_cd, preferred_element_type=jnp.float32) + bq      # (CD, N)
        pkv = jnp.dot(wkv, x_cd, preferred_element_type=jnp.float32) + bkv   # (2CD, N)
        pk = pkv[:CD]                       # (CD, N)
        pv = pkv[CD:]                       # (CD, N)

        # --- energy[i, j] = sum_k pq[k, i] * pk[k, j]   (one K = C*D dot) ---
        energy = lax.dot_general(pq, pk, (((0,), (0,)), ((), ())),
                                 preferred_element_type=jnp.float32)         # (N, N)

        # --- softmax over j, modulate by confidence (C == N broadcast) ------
        emax = jnp.max(energy, axis=-1, keepdims=True)
        ee = jnp.exp(energy - emax)
        attn = ee / jnp.sum(ee, axis=-1, keepdims=True)                       # (N, N)
        attn = conf * attn

        # --- out^T[i, k] = sum_j attn[i, j] * pv[k, j]; residual stays
        #     transposed so the store below is a single 64-lane-wide write ---
        out_t = lax.dot_general(attn, pv, (((1,), (1,)), ((), ())),
                                preferred_element_type=jnp.float32)           # (N, CD)
        o_ref[b] = gamma * out_t + kv_t_ref[b]


def attention_pallas(q5, kv5, wq, bq, wk, bk, wv, bv, gamma):
    B, C, D, H, W = q5.shape
    N = H * W
    CD = C * D
    assert C == N or C == 1, "module broadcasting requires C == H*W (or C == 1)"

    f32 = jnp.float32
    q5 = q5.astype(f32)
    kv5 = kv5.astype(f32)

    # Activation layouts (wrapper-side layout plumbing, all tiny).
    q_kron = q5.reshape(B, CD, N)           # exact .view(B, C*D, H*W) semantics
    q_conf = q5.reshape(B, C, D, N)         # for the softmax-over-D confidence
    kv_kron = kv5.reshape(B, CD, N)
    kv_t = kv_kron.transpose(0, 2, 1)       # (B, N, CD) residual / output layout

    # Kron-expand the 1x1 Conv3d weights so the projections come out directly
    # in (C*D, N) layout; stack Wk/Wv (same input) into one weight.
    eye_d = jnp.eye(D, dtype=f32)
    wq_kron = jnp.kron(wq.astype(f32), eye_d)                          # (CD, CD)
    wkv_kron = jnp.concatenate(
        [jnp.kron(wk.astype(f32), eye_d), jnp.kron(wv.astype(f32), eye_d)],
        axis=0)                                                        # (2CD, CD)
    bq_kron = jnp.repeat(bq.astype(f32), D).reshape(CD, 1)
    bkv_kron = jnp.concatenate(
        [jnp.repeat(bk.astype(f32), D), jnp.repeat(bv.astype(f32), D)]
    ).reshape(2 * CD, 1)
    gamma_arr = jnp.asarray(gamma, f32).reshape(1)

    # Generation-aware batch handling: fold all batches into one grid step on
    # single-TC chips (v5e/v6e); one batch per parallel step on v7x (2 TCs).
    try:
        kind = jax.devices()[0].device_kind.lower()
    except Exception:
        kind = ""
    bb = 1 if "7" in kind else B            # batches per grid step
    steps = B // bb

    out_t = pl.pallas_call(
        _attention_kernel,
        out_shape=jax.ShapeDtypeStruct((B, N, CD), f32),
        grid=(steps,),
        in_specs=[
            pl.BlockSpec((bb, CD, N), lambda i: (i, 0, 0)),        # q  (proj layout)
            pl.BlockSpec((bb, C, D, N), lambda i: (i, 0, 0, 0)),   # q  (conf layout)
            pl.BlockSpec((bb, CD, N), lambda i: (i, 0, 0)),        # kv (proj layout)
            pl.BlockSpec((bb, N, CD), lambda i: (i, 0, 0)),        # kv (residual layout)
            pl.BlockSpec((CD, CD), lambda i: (0, 0)),              # kron Wq
            pl.BlockSpec((2 * CD, CD), lambda i: (0, 0)),          # kron [Wk; Wv]
            pl.BlockSpec((CD, 1), lambda i: (0, 0)),               # bq
            pl.BlockSpec((2 * CD, 1), lambda i: (0, 0)),           # [bk; bv]
            pl.BlockSpec(memory_space=pltpu.MemorySpace.SMEM),     # gamma scalar
        ],
        out_specs=pl.BlockSpec((bb, N, CD), lambda i: (i, 0, 0)),
        compiler_params=pltpu.CompilerParams(
            dimension_semantics=("parallel",)),
    )(q_kron, q_conf, kv_kron, kv_t, wq_kron, wkv_kron,
      bq_kron, bkv_kron, gamma_arr)

    # (B, N, C*D) -> (B, C, D, H, W)
    return out_t.transpose(0, 2, 1).reshape(B, C, D, H, W)


def attention_reference(q5, kv5, wq, bq, wk, bk, wv, bv, gamma):
    """Pure-JAX replica of the PyTorch forward, for verification."""
    B, C, D, H, W = q5.shape
    N = H * W
    conf = jax.nn.softmax(q5, axis=2).max(axis=2).reshape(B, C, N)

    def conv1x1(w, b, x):
        return jnp.einsum('oc,bcdhw->bodhw', w, x) + b[None, :, None, None, None]

    pq = conv1x1(wq, bq, q5).reshape(B, C * D, N).transpose(0, 2, 1)   # (B,N,CD)
    pk = conv1x1(wk, bk, kv5).reshape(B, C * D, N)                     # (B,CD,N)
    energy = jnp.einsum('bnm,bmk->bnk', pq, pk)                        # (B,N,N)
    attn = jax.nn.softmax(energy, axis=-1)
    attn = conf * attn
    pv = conv1x1(wv, bv, kv5).reshape(B, C * D, N)
    out = jnp.einsum('bmn,bkn->bmk', pv, attn)                         # pv @ attn^T
    out = out.reshape(B, C, D, H, W)
    return gamma * out + kv5


if __name__ == "__main__":
    B, C, D, H, W = 2, 16, 4, 4, 4    # C == H*W, required by the module itself

    key = jax.random.PRNGKey(0)
    k_q, k_kv, k_wq, k_wk, k_wv, k_bq, k_bk, k_bv = jax.random.split(key, 8)

    q5 = jax.random.normal(k_q, (B, C, D, H, W), dtype=jnp.float32)
    kv5 = jax.random.normal(k_kv, (B, C, D, H, W), dtype=jnp.float32)

    # Deterministic synthetic parameters (Conv3d kernel_size=1 -> (C, C) weight).
    wq = 0.1 * jax.random.normal(k_wq, (C, C), dtype=jnp.float32)
    wk = 0.1 * jax.random.normal(k_wk, (C, C), dtype=jnp.float32)
    wv = 0.1 * jax.random.normal(k_wv, (C, C), dtype=jnp.float32)
    bq = 0.1 * jax.random.normal(k_bq, (C,), dtype=jnp.float32)
    bk = 0.1 * jax.random.normal(k_bk, (C,), dtype=jnp.float32)
    bv = 0.1 * jax.random.normal(k_bv, (C,), dtype=jnp.float32)
    # PyTorch inits gamma to 0 (which would trivially return kv); use a nonzero
    # deterministic value so the attention path is actually exercised.
    gamma = jnp.float32(0.7)

    out = attention_pallas(q5, kv5, wq, bq, wk, bk, wv, bv, gamma)
    out = jax.block_until_ready(out)

    ref = attention_reference(q5, kv5, wq, bq, wk, bk, wv, bv, gamma)
    assert out.shape == (B, C, D, H, W)
    assert jnp.allclose(out, ref, rtol=1e-4, atol=1e-4), \
        f"max abs err {jnp.max(jnp.abs(out - ref))}"

    print("KERNEL_OK")
</pallas_src>

<mosaic_0001>
module attributes {stable_mosaic.version = 11 : i64} {
  func.func @_attention_kernel(%arg0: i32, %arg1: memref<2x64x16xf32, #tpu.memory_space<vmem>>, %arg2: memref<2x16x4x16xf32, #tpu.memory_space<vmem>>, %arg3: memref<2x64x16xf32, #tpu.memory_space<vmem>>, %arg4: memref<2x16x64xf32, #tpu.memory_space<vmem>>, %arg5: memref<64x64xf32, #tpu.memory_space<vmem>>, %arg6: memref<128x64xf32, #tpu.memory_space<vmem>>, %arg7: memref<64x1xf32, #tpu.memory_space<vmem>>, %arg8: memref<128x1xf32, #tpu.memory_space<vmem>>, %arg9: memref<1xf32, #tpu.memory_space<smem>>, %arg10: memref<2x16x64xf32, #tpu.memory_space<vmem>>) attributes {dimension_semantics = [#tpu.dimension_semantics<parallel>], iteration_bounds = array<i64: 1>, scalar_prefetch = 0 : i64, scratch_operands = 0 : i64, tpu.core_type = #tpu.core_type<tc>, window_params = [{transform_indices = @transform_0, window_bounds = array<i64: 2, 64, 16>}, {transform_indices = @transform_1, window_bounds = array<i64: 2, 16, 4, 16>}, {transform_indices = @transform_2, window_bounds = array<i64: 2, 64, 16>}, {transform_indices = @transform_3, window_bounds = array<i64: 2, 16, 64>}, {pipeline_mode = #tpu.pipeline_mode<synchronous>, transform_indices = @transform_4, window_bounds = array<i64: 64, 64>}, {pipeline_mode = #tpu.pipeline_mode<synchronous>, transform_indices = @transform_5, window_bounds = array<i64: 128, 64>}, {pipeline_mode = #tpu.pipeline_mode<synchronous>, transform_indices = @transform_6, window_bounds = array<i64: 64, 1>}, {pipeline_mode = #tpu.pipeline_mode<synchronous>, transform_indices = @transform_7, window_bounds = array<i64: 128, 1>}, {transform_indices = @transform_8, window_bounds = array<i64: 1>}, {transform_indices = @transform_9, window_bounds = array<i64: 2, 16, 64>}]} {
    %c0 = arith.constant 0 : index
    %c0_0 = arith.constant 0 : index
    %0 = vector.load %arg5[%c0, %c0_0] : memref<64x64xf32, #tpu.memory_space<vmem>>, vector<64x64xf32>
    %c0_1 = arith.constant 0 : index
    %c0_2 = arith.constant 0 : index
    %1 = vector.load %arg6[%c0_1, %c0_2] : memref<128x64xf32, #tpu.memory_space<vmem>>, vector<128x64xf32>
    %c0_3 = arith.constant 0 : index
    %c0_4 = arith.constant 0 : index
    %2 = vector.load %arg7[%c0_3, %c0_4] : memref<64x1xf32, #tpu.memory_space<vmem>>, vector<64x1xf32>
    %c0_5 = arith.constant 0 : index
    %c0_6 = arith.constant 0 : index
    %3 = vector.load %arg8[%c0_5, %c0_6] : memref<128x1xf32, #tpu.memory_space<vmem>>, vector<128x1xf32>
    %c0_7 = arith.constant 0 : index
    %4 = memref.load %arg9[%c0_7] : memref<1xf32, #tpu.memory_space<smem>>
    %c0_8 = arith.constant 0 : index
    %c0_9 = arith.constant 0 : index
    %c0_10 = arith.constant 0 : index
    %5 = vector.load %arg1[%c0_8, %c0_9, %c0_10] : memref<2x64x16xf32, #tpu.memory_space<vmem>>, vector<1x64x16xf32>
    %6 = vector.shape_cast %5 : vector<1x64x16xf32> to vector<64x16xf32>
    %c0_11 = arith.constant 0 : index
    %c0_12 = arith.constant 0 : index
    %c0_13 = arith.constant 0 : index
    %7 = vector.load %arg3[%c0_11, %c0_12, %c0_13] : memref<2x64x16xf32, #tpu.memory_space<vmem>>, vector<1x64x16xf32>
    %8 = vector.shape_cast %7 : vector<1x64x16xf32> to vector<64x16xf32>
    %c0_14 = arith.constant 0 : index
    %c0_15 = arith.constant 0 : index
    %c0_16 = arith.constant 0 : index
    %c0_17 = arith.constant 0 : index
    %9 = vector.load %arg2[%c0_14, %c0_15, %c0_16, %c0_17] : memref<2x16x4x16xf32, #tpu.memory_space<vmem>>, vector<1x16x4x16xf32>
    %10 = vector.shape_cast %9 : vector<1x16x4x16xf32> to vector<16x4x16xf32>
    %cst = arith.constant dense<0xFF800000> : vector<16x16xf32>
    %11 = vector.multi_reduction <maximumf>, %10, %cst [1] : vector<16x4x16xf32> to vector<16x16xf32>
    %12 = vector.shape_cast %11 : vector<16x16xf32> to vector<16x1x16xf32>
    %13 = vector.broadcast %12 : vector<16x1x16xf32> to vector<16x4x16xf32>
    %14 = arith.subf %10, %13 : vector<16x4x16xf32>
    %15 = math.exp %14 : vector<16x4x16xf32>
    %cst_18 = arith.constant dense<0.000000e+00> : vector<16x16xf32>
    %16 = vector.multi_reduction <add>, %15, %cst_18 [1] : vector<16x4x16xf32> to vector<16x16xf32>
    %cst_19 = arith.constant 1.000000e+00 : f32
    %17 = vector.broadcast %cst_19 : f32 to vector<16x16xf32>
    %18 = arith.divf %17, %16 : vector<16x16xf32>
    %cst_20 = arith.constant dense<0.000000e+00> : vector<64x16xf32>
    %19 = tpu.matmul %0, %6, %cst_20 {dimension_numbers = #tpu.dot_dimension_numbers<[1], [0], [0], [1], [0, 0, 1, 1], [], []>} : vector<64x64xf32>, vector<64x16xf32>, vector<64x16xf32> -> vector<64x16xf32>
    %20 = vector.broadcast %2 : vector<64x1xf32> to vector<64x16xf32>
    %21 = arith.addf %19, %20 : vector<64x16xf32>
    %cst_21 = arith.constant dense<0.000000e+00> : vector<128x16xf32>
    %22 = tpu.matmul %1, %8, %cst_21 {dimension_numbers = #tpu.dot_dimension_numbers<[1], [0], [0], [1], [0, 0, 1, 1], [], []>} : vector<128x64xf32>, vector<64x16xf32>, vector<128x16xf32> -> vector<128x16xf32>
    %23 = vector.broadcast %3 : vector<128x1xf32> to vector<128x16xf32>
    %24 = arith.addf %22, %23 : vector<128x16xf32>
    %25 = vector.extract_strided_slice %24 {offsets = [0, 0], sizes = [64, 16], strides = [1, 1]} : vector<128x16xf32> to vector<64x16xf32>
    %26 = vector.extract_strided_slice %24 {offsets = [64, 0], sizes = [64, 16], strides = [1, 1]} : vector<128x16xf32> to vector<64x16xf32>
    %cst_22 = arith.constant dense<0.000000e+00> : vector<16x16xf32>
    %27 = tpu.matmul %21, %25, %cst_22 {dimension_numbers = #tpu.dot_dimension_numbers<[0], [0], [1], [1], [0, 1, 1, 1], [], []>} : vector<64x16xf32>, vector<64x16xf32>, vector<16x16xf32> -> vector<16x16xf32>
    %cst_23 = arith.constant dense<0xFF800000> : vector<16xf32>
    %28 = vector.multi_reduction <maximumf>, %27, %cst_23 [1] : vector<16x16xf32> to vector<16xf32>
    %29 = vector.shape_cast %28 : vector<16xf32> to vector<16x1xf32>
    %30 = vector.broadcast %29 : vector<16x1xf32> to vector<16x16xf32>
    %31 = arith.subf %27, %30 : vector<16x16xf32>
    %32 = math.exp %31 : vector<16x16xf32>
    %cst_24 = arith.constant dense<0.000000e+00> : vector<16xf32>
    %33 = vector.multi_reduction <add>, %32, %cst_24 [1] : vector<16x16xf32> to vector<16xf32>
    %34 = vector.shape_cast %33 : vector<16xf32> to vector<16x1xf32>
    %35 = vector.broadcast %34 : vector<16x1xf32> to vector<16x16xf32>
    %36 = arith.divf %32, %35 : vector<16x16xf32>
    %37 = arith.mulf %18, %36 : vector<16x16xf32>
    %cst_25 = arith.constant dense<0.000000e+00> : vector<16x64xf32>
    %38 = tpu.matmul %37, %26, %cst_25 {dimension_numbers = #tpu.dot_dimension_numbers<[1], [1], [0], [0], [0, 0, 1, 0], [], []>} : vector<16x16xf32>, vector<64x16xf32>, vector<16x64xf32> -> vector<16x64xf32>
    %39 = vector.broadcast %4 : f32 to vector<16x64xf32>
    %40 = arith.mulf %39, %38 : vector<16x64xf32>
    %c0_26 = arith.constant 0 : index
    %c0_27 = arith.constant 0 : index
    %c0_28 = arith.constant 0 : index
    %41 = vector.load %arg4[%c0_26, %c0_27, %c0_28] : memref<2x16x64xf32, #tpu.memory_space<vmem>>, vector<1x16x64xf32>
    %42 = vector.shape_cast %41 : vector<1x16x64xf32> to vector<16x64xf32>
    %43 = arith.addf %40, %42 : vector<16x64xf32>
    %c0_29 = arith.constant 0 : index
    %c0_30 = arith.constant 0 : index
    %c0_31 = arith.constant 0 : index
    %44 = vector.load %arg10[%c0_29, %c0_30, %c0_31] : memref<2x16x64xf32, #tpu.memory_space<vmem>>, vector<1x16x64xf32>
    %45 = vector.shape_cast %44 : vector<1x16x64xf32> to vector<16x64xf32>
    %46 = vector.shape_cast %43 : vector<16x64xf32> to vector<1x16x64xf32>
    tpu.vector_store %arg10[%c0_29, %c0_30, %c0_31], %46 {strides = array<i32>} : memref<2x16x64xf32, #tpu.memory_space<vmem>>, vector<1x16x64xf32>,
    %c1 = arith.constant 1 : index
    %c0_32 = arith.constant 0 : index
    %c0_33 = arith.constant 0 : index
    %47 = vector.load %arg1[%c1, %c0_32, %c0_33] : memref<2x64x16xf32, #tpu.memory_space<vmem>>, vector<1x64x16xf32>
    %48 = vector.shape_cast %47 : vector<1x64x16xf32> to vector<64x16xf32>
    %c1_34 = arith.constant 1 : index
    %c0_35 = arith.constant 0 : index
    %c0_36 = arith.constant 0 : index
    %49 = vector.load %arg3[%c1_34, %c0_35, %c0_36] : memref<2x64x16xf32, #tpu.memory_space<vmem>>, vector<1x64x16xf32>
    %50 = vector.shape_cast %49 : vector<1x64x16xf32> to vector<64x16xf32>
    %c1_37 = arith.constant 1 : index
    %c0_38 = arith.constant 0 : index
    %c0_39 = arith.constant 0 : index
    %c0_40 = arith.constant 0 : index
    %51 = vector.load %arg2[%c1_37, %c0_38, %c0_39, %c0_40] : memref<2x16x4x16xf32, #tpu.memory_space<vmem>>, vector<1x16x4x16xf32>
    %52 = vector.shape_cast %51 : vector<1x16x4x16xf32> to vector<16x4x16xf32>
    %cst_41 = arith.constant dense<0xFF800000> : vector<16x16xf32>
    %53 = vector.multi_reduction <maximumf>, %52, %cst_41 [1] : vector<16x4x16xf32> to vector<16x16xf32>
    %54 = vector.shape_cast %53 : vector<16x16xf32> to vector<16x1x16xf32>
    %55 = vector.broadcast %54 : vector<16x1x16xf32> to vector<16x4x16xf32>
    %56 = arith.subf %52, %55 : vector<16x4x16xf32>
    %57 = math.exp %56 : vector<16x4x16xf32>
    %cst_42 = arith.constant dense<0.000000e+00> : vector<16x16xf32>
    %58 = vector.multi_reduction <add>, %57, %cst_42 [1] : vector<16x4x16xf32> to vector<16x16xf32>
    %cst_43 = arith.constant 1.000000e+00 : f32
    %59 = vector.broadcast %cst_43 : f32 to vector<16x16xf32>
    %60 = arith.divf %59, %58 : vector<16x16xf32>
    %cst_44 = arith.constant dense<0.000000e+00> : vector<64x16xf32>
    %61 = tpu.matmul %0, %48, %cst_44 {dimension_numbers = #tpu.dot_dimension_numbers<[1], [0], [0], [1], [0, 0, 1, 1], [], []>} : vector<64x64xf32>, vector<64x16xf32>, vector<64x16xf32> -> vector<64x16xf32>
    %62 = vector.broadcast %2 : vector<64x1xf32> to vector<64x16xf32>
    %63 = arith.addf %61, %62 : vector<64x16xf32>
    %cst_45 = arith.constant dense<0.000000e+00> : vector<128x16xf32>
    %64 = tpu.matmul %1, %50, %cst_45 {dimension_numbers = #tpu.dot_dimension_numbers<[1], [0], [0], [1], [0, 0, 1, 1], [], []>} : vector<128x64xf32>, vector<64x16xf32>, vector<128x16xf32> -> vector<128x16xf32>
    %65 = vector.broadcast %3 : vector<128x1xf32> to vector<128x16xf32>
    %66 = arith.addf %64, %65 : vector<128x16xf32>
    %67 = vector.extract_strided_slice %66 {offsets = [0, 0], sizes = [64, 16], strides = [1, 1]} : vector<128x16xf32> to vector<64x16xf32>
    %68 = vector.extract_strided_slice %66 {offsets = [64, 0], sizes = [64, 16], strides = [1, 1]} : vector<128x16xf32> to vector<64x16xf32>
    %cst_46 = arith.constant dense<0.000000e+00> : vector<16x16xf32>
    %69 = tpu.matmul %63, %67, %cst_46 {dimension_numbers = #tpu.dot_dimension_numbers<[0], [0], [1], [1], [0, 1, 1, 1], [], []>} : vector<64x16xf32>, vector<64x16xf32>, vector<16x16xf32> -> vector<16x16xf32>
    %cst_47 = arith.constant dense<0xFF800000> : vector<16xf32>
    %70 = vector.multi_reduction <maximumf>, %69, %cst_47 [1] : vector<16x16xf32> to vector<16xf32>
    %71 = vector.shape_cast %70 : vector<16xf32> to vector<16x1xf32>
    %72 = vector.broadcast %71 : vector<16x1xf32> to vector<16x16xf32>
    %73 = arith.subf %69, %72 : vector<16x16xf32>
    %74 = math.exp %73 : vector<16x16xf32>
    %cst_48 = arith.constant dense<0.000000e+00> : vector<16xf32>
    %75 = vector.multi_reduction <add>, %74, %cst_48 [1] : vector<16x16xf32> to vector<16xf32>
    %76 = vector.shape_cast %75 : vector<16xf32> to vector<16x1xf32>
    %77 = vector.broadcast %76 : vector<16x1xf32> to vector<16x16xf32>
    %78 = arith.divf %74, %77 : vector<16x16xf32>
    %79 = arith.mulf %60, %78 : vector<16x16xf32>
    %cst_49 = arith.constant dense<0.000000e+00> : vector<16x64xf32>
    %80 = tpu.matmul %79, %68, %cst_49 {dimension_numbers = #tpu.dot_dimension_numbers<[1], [1], [0], [0], [0, 0, 1, 0], [], []>} : vector<16x16xf32>, vector<64x16xf32>, vector<16x64xf32> -> vector<16x64xf32>
    %81 = vector.broadcast %4 : f32 to vector<16x64xf32>
    %82 = arith.mulf %81, %80 : vector<16x64xf32>
    %c1_50 = arith.constant 1 : index
    %c0_51 = arith.constant 0 : index
    %c0_52 = arith.constant 0 : index
    %83 = vector.load %arg4[%c1_50, %c0_51, %c0_52] : memref<2x16x64xf32, #tpu.memory_space<vmem>>, vector<1x16x64xf32>
    %84 = vector.shape_cast %83 : vector<1x16x64xf32> to vector<16x64xf32>
    %85 = arith.addf %82, %84 : vector<16x64xf32>
    %c1_53 = arith.constant 1 : index
    %c0_54 = arith.constant 0 : index
    %c0_55 = arith.constant 0 : index
    %86 = vector.load %arg10[%c1_53, %c0_54, %c0_55] : memref<2x16x64xf32, #tpu.memory_space<vmem>>, vector<1x16x64xf32>
    %87 = vector.shape_cast %86 : vector<1x16x64xf32> to vector<16x64xf32>
    %88 = vector.shape_cast %85 : vector<16x64xf32> to vector<1x16x64xf32>
    tpu.vector_store %arg10[%c1_53, %c0_54, %c0_55], %88 {strides = array<i32>} : memref<2x16x64xf32, #tpu.memory_space<vmem>>, vector<1x16x64xf32>,
    return
  }
  func.func @transform_0(%arg0: i32) -> (i32, i32, i32) {
    %c0_i32 = arith.constant 0 : i32
    %c0_i32_0 = arith.constant 0 : i32
    %c0_i32_1 = arith.constant 0 : i32
    return %arg0, %c0_i32, %c0_i32_0 : i32, i32, i32
  }
  func.func @transform_1(%arg0: i32) -> (i32, i32, i32, i32) {
    %c0_i32 = arith.constant 0 : i32
    %c0_i32_0 = arith.constant 0 : i32
    %c0_i32_1 = arith.constant 0 : i32
    %c0_i32_2 = arith.constant 0 : i32
    return %arg0, %c0_i32, %c0_i32_0, %c0_i32_1 : i32, i32, i32, i32
  }
  func.func @transform_2(%arg0: i32) -> (i32, i32, i32) {
    %c0_i32 = arith.constant 0 : i32
    %c0_i32_0 = arith.constant 0 : i32
    %c0_i32_1 = arith.constant 0 : i32
    return %arg0, %c0_i32, %c0_i32_0 : i32, i32, i32
  }
  func.func @transform_3(%arg0: i32) -> (i32, i32, i32) {
    %c0_i32 = arith.constant 0 : i32
    %c0_i32_0 = arith.constant 0 : i32
    %c0_i32_1 = arith.constant 0 : i32
    return %arg0, %c0_i32, %c0_i32_0 : i32, i32, i32
  }
  func.func @transform_4(%arg0: i32) -> (i32, i32) {
    %c0_i32 = arith.constant 0 : i32
    %c0_i32_0 = arith.constant 0 : i32
    %c0_i32_1 = arith.constant 0 : i32
    return %c0_i32, %c0_i32_0 : i32, i32
  }
  func.func @transform_5(%arg0: i32) -> (i32, i32) {
    %c0_i32 = arith.constant 0 : i32
    %c0_i32_0 = arith.constant 0 : i32
    %c0_i32_1 = arith.constant 0 : i32
    return %c0_i32, %c0_i32_0 : i32, i32
  }
  func.func @transform_6(%arg0: i32) -> (i32, i32) {
    %c0_i32 = arith.constant 0 : i32
    %c0_i32_0 = arith.constant 0 : i32
    %c0_i32_1 = arith.constant 0 : i32
    return %c0_i32, %c0_i32_0 : i32, i32
  }
  func.func @transform_7(%arg0: i32) -> (i32, i32) {
    %c0_i32 = arith.constant 0 : i32
    %c0_i32_0 = arith.constant 0 : i32
    %c0_i32_1 = arith.constant 0 : i32
    return %c0_i32, %c0_i32_0 : i32, i32
  }
  func.func @transform_8(%arg0: i32) -> i32 {
    %c0_i32 = arith.constant 0 : i32
    %c0_i32_0 = arith.constant 0 : i32
    return %c0_i32 : i32
  }
  func.func @transform_9(%arg0: i32) -> (i32, i32, i32) {
    %c0_i32 = arith.constant 0 : i32
    %c0_i32_0 = arith.constant 0 : i32
    %c0_i32_1 = arith.constant 0 : i32
    return %arg0, %c0_i32, %c0_i32_0 : i32, i32, i32
  }
}

</mosaic_0001>

<llo_original>
// kernel: tpu_custom_call.1
$region0: #{tpu_custom_call.1}
  #allocation0 [shape = 'u32[]', space=smem, size = 0x4, offset = 0x4, fixed_abs, tag = 'smem constant byte address 0x4 - core index']
  #allocation1 [shape = 'u32[144,128]{1,0:T(1,128)}', space=vmem, size = 0x12000, scoped, tag = 'internal scratch']
  #allocation2 [shape = 'f32[1]{0:T(128)S(6)}', space=smem, size = 0x200, scoped, tag = 'scoped memory for tpu_custom_call.1']
  %s0 = inlined_call_operand.vmem [shape: f32[2,64,16], index: 0, kind: input, shape index: {}]
  %s1 = inlined_call_operand.vmem [shape: f32[2,16,4,16], index: 1, kind: input, shape index: {}]
  %s2 = inlined_call_operand.vmem [shape: f32[2,64,16], index: 2, kind: input, shape index: {}]
  %s3 = inlined_call_operand.vmem [shape: f32[2,16,64], index: 3, kind: input, shape index: {}]
  %s4 = inlined_call_operand.vmem [shape: f32[64,64], index: 4, kind: input, shape index: {}]
  %s5 = inlined_call_operand.vmem [shape: f32[128,64], index: 5, kind: input, shape index: {}]
  %s6 = inlined_call_operand.vmem [shape: f32[64,1], index: 6, kind: input, shape index: {}]
  %s7 = inlined_call_operand.vmem [shape: f32[128,1], index: 7, kind: input, shape index: {}]
  %s8 = inlined_call_operand.<no memory space> [shape: f32[1], index: 8, kind: input, shape index: {}]
  %s9 = inlined_call_operand.hbm [shape: f32[2,16,64], index: 9, kind: output, shape index: {}]
  %s10 = sld [smem:[#allocation0]]
  $region46: #{tpu_custom_call.1} parent=0
    _
  %s12 = ssub.s32 1, %s10
  %s13 = scalar_select 0, %s12, %s10
  %14 = sst [smem:[#allocation2]] %s8
  $region1: #{tpu_custom_call.1} parent=0
    #allocation3 [shape = 'u8[16384]{0}', space=vmem, size = 0x4000, scoped, tag = 'output window, operand 0, single buffered']
    #allocation4 [shape = 's32[1]{0}', space=sflag, size = 0x4, scoped, tag = 'scoped memory for tpu_custom_call.1']
    %15 = vsyncpa [#allocation4], 0
    // Predicated region
    $region2: #{tpu_custom_call.1} parent=1 // pred_check
      _
    $region3: #{tpu_custom_call.1} parent=1 // pred_check_branch
      %17 = sbr.rel (0) target = $region5
    $region4: #{tpu_custom_call.1} parent=1 // pred_region
      _
    $region5: #{tpu_custom_call.1} parent=1 // pred_fallthru
      _
    // Predicated region
    $region6: #{tpu_custom_call.1} parent=1 // pred_check
      _
    $region7: #{tpu_custom_call.1} parent=1 // pred_check_branch
      %19 = sbr.rel (0) target = $region9
    $region8: #{tpu_custom_call.1} parent=1 // pred_region
      _
    $region9: #{tpu_custom_call.1} parent=1 // pred_fallthru
      _
    // Predicated region
    $region10: #{tpu_custom_call.1} parent=1 // pred_check
      _
    $region11: #{tpu_custom_call.1} parent=1 // pred_check_branch
      %21 = sbr.rel (0) target = $region13
    $region12: #{tpu_custom_call.1} parent=1 // pred_region
      _
    $region13: #{tpu_custom_call.1} parent=1 // pred_fallthru
      _
    // Predicated region
    $region14: #{tpu_custom_call.1} parent=1 // pred_check
      _
    $region15: #{tpu_custom_call.1} parent=1 // pred_check_branch
      %23 = sbr.rel (0) target = $region17
    $region16: #{tpu_custom_call.1} parent=1 // pred_region
      _
    $region17: #{tpu_custom_call.1} parent=1 // pred_fallthru
      _
    // Predicated region
    $region18: #{tpu_custom_call.1} parent=1 // pred_check
      _
    $region19: #{tpu_custom_call.1} parent=1 // pred_check_branch
      %25 = sbr.rel (0) target = $region21
    $region20: #{tpu_custom_call.1} parent=1 // pred_region
      _
    $region21: #{tpu_custom_call.1} parent=1 // pred_fallthru
      _
    // Predicated region
    $region22: #{tpu_custom_call.1} parent=1 // pred_check
      _
    $region23: #{tpu_custom_call.1} parent=1 // pred_check_branch
      %27 = sbr.rel (0) target = $region25
    $region24: #{tpu_custom_call.1} parent=1 // pred_region
      _
    $region25: #{tpu_custom_call.1} parent=1 // pred_fallthru
      _
    // Predicated region
    $region26: #{tpu_custom_call.1} parent=1 // pred_check
      _
    $region27: #{tpu_custom_call.1} parent=1 // pred_check_branch
      %29 = sbr.rel (0) target = $region29
    $region28: #{tpu_custom_call.1} parent=1 // pred_region
      _
    $region29: #{tpu_custom_call.1} parent=1 // pred_fallthru
      _
    // Predicated region
    $region30: #{tpu_custom_call.1} parent=1 // pred_check
      _
    $region31: #{tpu_custom_call.1} parent=1 // pred_check_branch
      %31 = sbr.rel (0) target = $region33
    $region32: #{tpu_custom_call.1} parent=1 // pred_region
      _
    $region33: #{tpu_custom_call.1} parent=1 // pred_fallthru
      _
    // Predicated region
    $region34: #{tpu_custom_call.1} parent=1 // pred_check
      _
    $region35: #{tpu_custom_call.1} parent=1 // pred_check_branch
      %33 = sbr.rel (0) target = $region37
    $region36: #{tpu_custom_call.1} parent=1 // pred_region
      _
    $region37: #{tpu_custom_call.1} parent=1 // pred_fallthru
      _
    %v34 = vld [vmem:[%s4] sm:$0xff]
    %v35 = vld [vmem:[%s4 + $0x8] sm:$0xff]
    %v36 = vld [vmem:[%s4 + $0x10] sm:$0xff]
    %v37 = vld [vmem:[%s4 + $0x18] sm:$0xff]
    %v38 = vld [vmem:[%s4 + $0x20] sm:$0xff]
    %v39 = vld [vmem:[%s4 + $0x28] sm:$0xff]
    %v40 = vld [vmem:[%s4 + $0x30] sm:$0xff]
    %v41 = vld [vmem:[%s4 + $0x38] sm:$0xff]
    %v42 = vld [vmem:[%s5] sm:$0xff]
    %v43 = vld [vmem:[%s5 + $0x8] sm:$0xff]
    %v44 = vld [vmem:[%s5 + $0x10] sm:$0xff]
    %v45 = vld [vmem:[%s5 + $0x18] sm:$0xff]
    %v46 = vld [vmem:[%s5 + $0x20] sm:$0xff]
    %v47 = vld [vmem:[%s5 + $0x28] sm:$0xff]
    %v48 = vld [vmem:[%s5 + $0x30] sm:$0xff]
    %v49 = vld [vmem:[%s5 + $0x38] sm:$0xff]
    %v50 = vld [vmem:[%s5 + $0x40] sm:$0xff]
    %v51 = vld [vmem:[%s5 + $0x48] sm:$0xff]
    %v52 = vld [vmem:[%s5 + $0x50] sm:$0xff]
    %v53 = vld [vmem:[%s5 + $0x58] sm:$0xff]
    %v54 = vld [vmem:[%s5 + $0x60] sm:$0xff]
    %v55 = vld [vmem:[%s5 + $0x68] sm:$0xff]
    %v56 = vld [vmem:[%s5 + $0x70] sm:$0xff]
    %v57 = vld [vmem:[%s5 + $0x78] sm:$0xff]
    %v58 = vld [vmem:[%s6] sm:$0xff]
    %v59 = vld [vmem:[%s6 + $0x8] sm:$0xff]
    %v60 = vld [vmem:[%s6 + $0x10] sm:$0xff]
    %v61 = vld [vmem:[%s6 + $0x18] sm:$0xff]
    %v62 = vld [vmem:[%s6 + $0x20] sm:$0xff]
    %v63 = vld [vmem:[%s6 + $0x28] sm:$0xff]
    %v64 = vld [vmem:[%s6 + $0x30] sm:$0xff]
    %v65 = vld [vmem:[%s6 + $0x38] sm:$0xff]
    %v66 = vld [vmem:[%s7] sm:$0xff]
    %v67 = vld [vmem:[%s7 + $0x8] sm:$0xff]
    %v68 = vld [vmem:[%s7 + $0x10] sm:$0xff]
    %v69 = vld [vmem:[%s7 + $0x18] sm:$0xff]
    %v70 = vld [vmem:[%s7 + $0x20] sm:$0xff]
    %v71 = vld [vmem:[%s7 + $0x28] sm:$0xff]
    %v72 = vld [vmem:[%s7 + $0x30] sm:$0xff]
    %v73 = vld [vmem:[%s7 + $0x38] sm:$0xff]
    %v74 = vld [vmem:[%s7 + $0x40] sm:$0xff]
    %v75 = vld [vmem:[%s7 + $0x48] sm:$0xff]
    %v76 = vld [vmem:[%s7 + $0x50] sm:$0xff]
    %v77 = vld [vmem:[%s7 + $0x58] sm:$0xff]
    %v78 = vld [vmem:[%s7 + $0x60] sm:$0xff]
    %v79 = vld [vmem:[%s7 + $0x68] sm:$0xff]
    %v80 = vld [vmem:[%s7 + $0x70] sm:$0xff]
    %v81 = vld [vmem:[%s7 + $0x78] sm:$0xff]
    %s82 = sld [smem:[#allocation2]]
    %v83 = vld [vmem:[%s0] sm:$0xff]
    %v84 = vld [vmem:[%s0 + $0x8] sm:$0xff]
    %v85 = vld [vmem:[%s0 + $0x10] sm:$0xff]
    %v86 = vld [vmem:[%s0 + $0x18] sm:$0xff]
    %v87 = vld [vmem:[%s0 + $0x20] sm:$0xff]
    %v88 = vld [vmem:[%s0 + $0x28] sm:$0xff]
    %v89 = vld [vmem:[%s0 + $0x30] sm:$0xff]
    %v90 = vld [vmem:[%s0 + $0x38] sm:$0xff]
    %v91 = vld [vmem:[%s2] sm:$0xff]
    %v92 = vld [vmem:[%s2 + $0x8] sm:$0xff]
    %v93 = vld [vmem:[%s2 + $0x10] sm:$0xff]
    %v94 = vld [vmem:[%s2 + $0x18] sm:$0xff]
    %v95 = vld [vmem:[%s2 + $0x20] sm:$0xff]
    %v96 = vld [vmem:[%s2 + $0x28] sm:$0xff]
    %v97 = vld [vmem:[%s2 + $0x30] sm:$0xff]
    %v98 = vld [vmem:[%s2 + $0x38] sm:$0xff]
    %v99 = vld [vmem:[%s1] sm:$0xf]
    %v100 = vld [vmem:[%s1 + $0x4] sm:$0xf]
    %v101 = vld [vmem:[%s1 + $0x8] sm:$0xf]
    %v102 = vld [vmem:[%s1 + $0xc] sm:$0xf]
    %v103 = vld [vmem:[%s1 + $0x10] sm:$0xf]
    %v104 = vld [vmem:[%s1 + $0x14] sm:$0xf]
    %v105 = vld [vmem:[%s1 + $0x18] sm:$0xf]
    %v106 = vld [vmem:[%s1 + $0x1c] sm:$0xf]
    %v107 = vld [vmem:[%s1 + $0x20] sm:$0xf]
    %v108 = vld [vmem:[%s1 + $0x24] sm:$0xf]
    %v109 = vld [vmem:[%s1 + $0x28] sm:$0xf]
    %v110 = vld [vmem:[%s1 + $0x2c] sm:$0xf]
    %v111 = vld [vmem:[%s1 + $0x30] sm:$0xf]
    %v112 = vld [vmem:[%s1 + $0x34] sm:$0xf]
    %v113 = vld [vmem:[%s1 + $0x38] sm:$0xf]
    %v114 = vld [vmem:[%s1 + $0x3c] sm:$0xf]
    %vm115 = vcmask 125952
    %v116 = vsel %vm115, %v99, -inf
    %v117 = vrot.slane %v116, 4
    %v118 = vmax.f32 %v116, %v117
    %v119 = vrot.slane %v118, 2
    %v120 = vmax.f32 %v118, %v119
    %v121 = vrot.slane %v120, 1
    %v122 = vmax.f32 %v120, %v121
    %v123 = vsel %vm115, %v100, -inf
    %v124 = vrot.slane %v123, 4
    %v125 = vmax.f32 %v123, %v124
    %v126 = vrot.slane %v125, 2
    %v127 = vmax.f32 %v125, %v126
    %v128 = vrot.slane %v127, 1
    %v129 = vmax.f32 %v127, %v128
    %v130 = vsel %vm115, %v101, -inf
    %v131 = vrot.slane %v130, 4
    %v132 = vmax.f32 %v130, %v131
    %v133 = vrot.slane %v132, 2
    %v134 = vmax.f32 %v132, %v133
    %v135 = vrot.slane %v134, 1
    %v136 = vmax.f32 %v134, %v135
    %v137 = vsel %vm115, %v102, -inf
    %v138 = vrot.slane %v137, 4
    %v139 = vmax.f32 %v137, %v138
    %v140 = vrot.slane %v139, 2
    %v141 = vmax.f32 %v139, %v140
    %v142 = vrot.slane %v141, 1
    %v143 = vmax.f32 %v141, %v142
    %v144 = vsel %vm115, %v103, -inf
    %v145 = vrot.slane %v144, 4
    %v146 = vmax.f32 %v144, %v145
    %v147 = vrot.slane %v146, 2
    %v148 = vmax.f32 %v146, %v147
    %v149 = vrot.slane %v148, 1
    %v150 = vmax.f32 %v148, %v149
    %v151 = vsel %vm115, %v104, -inf
    %v152 = vrot.slane %v151, 4
    %v153 = vmax.f32 %v151, %v152
    %v154 = vrot.slane %v153, 2
    %v155 = vmax.f32 %v153, %v154
    %v156 = vrot.slane %v155, 1
    %v157 = vmax.f32 %v155, %v156
    %v158 = vsel %vm115, %v105, -inf
    %v159 = vrot.slane %v158, 4
    %v160 = vmax.f32 %v158, %v159
    %v161 = vrot.slane %v160, 2
    %v162 = vmax.f32 %v160, %v161
    %v163 = vrot.slane %v162, 1
    %v164 = vmax.f32 %v162, %v163
    %v165 = vsel %vm115, %v106, -inf
    %v166 = vrot.slane %v165, 4
    %v167 = vmax.f32 %v165, %v166
    %v168 = vrot.slane %v167, 2
    %v169 = vmax.f32 %v167, %v168
    %v170 = vrot.slane %v169, 1
    %v171 = vmax.f32 %v169, %v170
    %v172 = vsel %vm115, %v107, -inf
    %v173 = vrot.slane %v172, 4
    %v174 = vmax.f32 %v172, %v173
    %v175 = vrot.slane %v174, 2
    %v176 = vmax.f32 %v174, %v175
    %v177 = vrot.slane %v176, 1
    %v178 = vmax.f32 %v176, %v177
    %v179 = vsel %vm115, %v108, -inf
    %v180 = vrot.slane %v179, 4
    %v181 = vmax.f32 %v179, %v180
    %v182 = vrot.slane %v181, 2
    %v183 = vmax.f32 %v181, %v182
    %v184 = vrot.slane %v183, 1
    %v185 = vmax.f32 %v183, %v184
    %v186 = vsel %vm115, %v109, -inf
    %v187 = vrot.slane %v186, 4
    %v188 = vmax.f32 %v186, %v187
    %v189 = vrot.slane %v188, 2
    %v190 = vmax.f32 %v188, %v189
    %v191 = vrot.slane %v190, 1
    %v192 = vmax.f32 %v190, %v191
    %v193 = vsel %vm115, %v110, -inf
    %v194 = vrot.slane %v193, 4
    %v195 = vmax.f32 %v193, %v194
    %v196 = vrot.slane %v195, 2
    %v197 = vmax.f32 %v195, %v196
    %v198 = vrot.slane %v197, 1
    %v199 = vmax.f32 %v197, %v198
    %v200 = vsel %vm115, %v111, -inf
    %v201 = vrot.slane %v200, 4
    %v202 = vmax.f32 %v200, %v201
    %v203 = vrot.slane %v202, 2
    %v204 = vmax.f32 %v202, %v203
    %v205 = vrot.slane %v204, 1
    %v206 = vmax.f32 %v204, %v205
    %v207 = vsel %vm115, %v112, -inf
    %v208 = vrot.slane %v207, 4
    %v209 = vmax.f32 %v207, %v208
    %v210 = vrot.slane %v209, 2
    %v211 = vmax.f32 %v209, %v210
    %v212 = vrot.slane %v211, 1
    %v213 = vmax.f32 %v211, %v212
    %v214 = vsel %vm115, %v113, -inf
    %v215 = vrot.slane %v214, 4
    %v216 = vmax.f32 %v214, %v215
    %v217 = vrot.slane %v216, 2
    %v218 = vmax.f32 %v216, %v217
    %v219 = vrot.slane %v218, 1
    %v220 = vmax.f32 %v218, %v219
    %v221 = vsel %vm115, %v114, -inf
    %v222 = vrot.slane %v221, 4
    %v223 = vmax.f32 %v221, %v222
    %v224 = vrot.slane %v223, 2
    %v225 = vmax.f32 %v223, %v224
    %v226 = vrot.slane %v225, 1
    %v227 = vmax.f32 %v225, %v226
    %v228 = vsub.f32 %v99, %v122
    %v229 = vsub.f32 %v100, %v129
    %v230 = vsub.f32 %v101, %v136
    %v231 = vsub.f32 %v102, %v143
    %v232 = vsub.f32 %v103, %v150
    %v233 = vsub.f32 %v104, %v157
    %v234 = vsub.f32 %v105, %v164
    %v235 = vsub.f32 %v106, %v171
    %v236 = vsub.f32 %v107, %v178
    %v237 = vsub.f32 %v108, %v185
    %v238 = vsub.f32 %v109, %v192
    %v239 = vsub.f32 %v110, %v199
    %v240 = vsub.f32 %v111, %v206
    %v241 = vsub.f32 %v112, %v213
    %v242 = vsub.f32 %v113, %v220
    %v243 = vsub.f32 %v114, %v227
    %v244 = vmul.f32 %v228, 1.442695
    %v245 = vpow.pop %v244
    %v246 = vmul.f32 %v229, 1.442695
    %v247 = vpow.pop %v246
    %v248 = vmul.f32 %v230, 1.442695
    %v249 = vpow.pop %v248
    %v250 = vmul.f32 %v231, 1.442695
    %v251 = vpow.pop %v250
    %v252 = vmul.f32 %v232, 1.442695
    %v253 = vpow.pop %v252
    %v254 = vmul.f32 %v233, 1.442695
    %v255 = vpow.pop %v254
    %v256 = vmul.f32 %v234, 1.442695
    %v257 = vpow.pop %v256
    %v258 = vmul.f32 %v235, 1.442695
    %v259 = vpow.pop %v258
    %v260 = vmul.f32 %v236, 1.442695
    %v261 = vpow.pop %v260
    %v262 = vmul.f32 %v237, 1.442695
    %v263 = vpow.pop %v262
    %v264 = vmul.f32 %v238, 1.442695
    %v265 = vpow.pop %v264
    %v266 = vmul.f32 %v239, 1.442695
    %v267 = vpow.pop %v266
    %v268 = vmul.f32 %v240, 1.442695
    %v269 = vpow.pop %v268
    %v270 = vmul.f32 %v241, 1.442695
    %v271 = vpow.pop %v270
    %v272 = vmul.f32 %v242, 1.442695
    %v273 = vpow.pop %v272
    %v274 = vmul.f32 %v243, 1.442695
    %v275 = vpow.pop %v274
    %v276 = vsel %vm115, %v245, 0.0
    %v277 = vrot.slane %v276, 4
    %v278 = vadd.f32 %v276, %v277
    %v279 = vrot.slane %v278, 2
    %v280 = vadd.f32 %v278, %v279
    %v281 = vrot.slane %v280, 1
    %v282 = vadd.f32 %v280, %v281
    %v283 = vsel %vm115, %v247, 0.0
    %v284 = vrot.slane %v283, 4
    %v285 = vadd.f32 %v283, %v284
    %v286 = vrot.slane %v285, 2
    %v287 = vadd.f32 %v285, %v286
    %v288 = vrot.slane %v287, 1
    %v289 = vadd.f32 %v287, %v288
    %v290 = vsel %vm115, %v249, 0.0
    %v291 = vrot.slane %v290, 4
    %v292 = vadd.f32 %v290, %v291
    %v293 = vrot.slane %v292, 2
    %v294 = vadd.f32 %v292, %v293
    %v295 = vrot.slane %v294, 1
    %v296 = vadd.f32 %v294, %v295
    %v297 = vsel %vm115, %v251, 0.0
    %v298 = vrot.slane %v297, 4
    %v299 = vadd.f32 %v297, %v298
    %v300 = vrot.slane %v299, 2
    %v301 = vadd.f32 %v299, %v300
    %v302 = vrot.slane %v301, 1
    %v303 = vadd.f32 %v301, %v302
    %v304 = vsel %vm115, %v253, 0.0
    %v305 = vrot.slane %v304, 4
    %v306 = vadd.f32 %v304, %v305
    %v307 = vrot.slane %v306, 2
    %v308 = vadd.f32 %v306, %v307
    %v309 = vrot.slane %v308, 1
    %v310 = vadd.f32 %v308, %v309
    %v311 = vsel %vm115, %v255, 0.0
    %v312 = vrot.slane %v311, 4
    %v313 = vadd.f32 %v311, %v312
    %v314 = vrot.slane %v313, 2
    %v315 = vadd.f32 %v313, %v314
    %v316 = vrot.slane %v315, 1
    %v317 = vadd.f32 %v315, %v316
    %v318 = vsel %vm115, %v257, 0.0
    %v319 = vrot.slane %v318, 4
    %v320 = vadd.f32 %v318, %v319
    %v321 = vrot.slane %v320, 2
    %v322 = vadd.f32 %v320, %v321
    %v323 = vrot.slane %v322, 1
    %v324 = vadd.f32 %v322, %v323
    %v325 = vsel %vm115, %v259, 0.0
    %v326 = vrot.slane %v325, 4
    %v327 = vadd.f32 %v325, %v326
    %v328 = vrot.slane %v327, 2
    %v329 = vadd.f32 %v327, %v328
    %v330 = vrot.slane %v329, 1
    %v331 = vadd.f32 %v329, %v330
    %v332 = vsel %vm115, %v261, 0.0
    %v333 = vrot.slane %v332, 4
    %v334 = vadd.f32 %v332, %v333
    %v335 = vrot.slane %v334, 2
    %v336 = vadd.f32 %v334, %v335
    %v337 = vrot.slane %v336, 1
    %v338 = vadd.f32 %v336, %v337
    %v339 = vsel %vm115, %v263, 0.0
    %v340 = vrot.slane %v339, 4
    %v341 = vadd.f32 %v339, %v340
    %v342 = vrot.slane %v341, 2
    %v343 = vadd.f32 %v341, %v342
    %v344 = vrot.slane %v343, 1
    %v345 = vadd.f32 %v343, %v344
    %v346 = vsel %vm115, %v265, 0.0
    %v347 = vrot.slane %v346, 4
    %v348 = vadd.f32 %v346, %v347
    %v349 = vrot.slane %v348, 2
    %v350 = vadd.f32 %v348, %v349
    %v351 = vrot.slane %v350, 1
    %v352 = vadd.f32 %v350, %v351
    %v353 = vsel %vm115, %v267, 0.0
    %v354 = vrot.slane %v353, 4
    %v355 = vadd.f32 %v353, %v354
    %v356 = vrot.slane %v355, 2
    %v357 = vadd.f32 %v355, %v356
    %v358 = vrot.slane %v357, 1
    %v359 = vadd.f32 %v357, %v358
    %v360 = vsel %vm115, %v269, 0.0
    %v361 = vrot.slane %v360, 4
    %v362 = vadd.f32 %v360, %v361
    %v363 = vrot.slane %v362, 2
    %v364 = vadd.f32 %v362, %v363
    %v365 = vrot.slane %v364, 1
    %v366 = vadd.f32 %v364, %v365
    %v367 = vsel %vm115, %v271, 0.0
    %v368 = vrot.slane %v367, 4
    %v369 = vadd.f32 %v367, %v368
    %v370 = vrot.slane %v369, 2
    %v371 = vadd.f32 %v369, %v370
    %v372 = vrot.slane %v371, 1
    %v373 = vadd.f32 %v371, %v372
    %v374 = vsel %vm115, %v273, 0.0
    %v375 = vrot.slane %v374, 4
    %v376 = vadd.f32 %v374, %v375
    %v377 = vrot.slane %v376, 2
    %v378 = vadd.f32 %v376, %v377
    %v379 = vrot.slane %v378, 1
    %v380 = vadd.f32 %v378, %v379
    %v381 = vsel %vm115, %v275, 0.0
    %v382 = vrot.slane %v381, 4
    %v383 = vadd.f32 %v381, %v382
    %v384 = vrot.slane %v383, 2
    %v385 = vadd.f32 %v383, %v384
    %v386 = vrot.slane %v385, 1
    %v387 = vadd.f32 %v385, %v386
    %v388 = vrcp.pop %v282
    %v389 = vmul.f32 1.0, %v388
    %v390 = vrcp.pop %v289
    %v391 = vmul.f32 1.0, %v390
    %v392 = vrcp.pop %v296
    %v393 = vmul.f32 1.0, %v392
    %v394 = vrcp.pop %v303
    %v395 = vmul.f32 1.0, %v394
    %v396 = vrcp.pop %v310
    %v397 = vmul.f32 1.0, %v396
    %v398 = vrcp.pop %v317
    %v399 = vmul.f32 1.0, %v398
    %v400 = vrcp.pop %v324
    %v401 = vmul.f32 1.0, %v400
    %v402 = vrcp.pop %v331
    %v403 = vmul.f32 1.0, %v402
    %v404 = vrcp.pop %v338
    %v405 = vmul.f32 1.0, %v404
    %v406 = vrcp.pop %v345
    %v407 = vmul.f32 1.0, %v406
    %v408 = vrcp.pop %v352
    %v409 = vmul.f32 1.0, %v408
    %v410 = vrcp.pop %v359
    %v411 = vmul.f32 1.0, %v410
    %v412 = vrcp.pop %v366
    %v413 = vmul.f32 1.0, %v412
    %v414 = vrcp.pop %v373
    %v415 = vmul.f32 1.0, %v414
    %v416 = vrcp.pop %v380
    %v417 = vmul.f32 1.0, %v416
    %v418 = vrcp.pop %v387
    %v419 = vmul.f32 1.0, %v418
    %421 = vset.pattern.permute.xlu0 0
    %422 = vperm.xlu0 %421, %v58
    %v423 = vpop.permute.xlu0 %422
    %426 = vset.pattern.permute.xlu0 0
    %427 = vperm.xlu0 %426, %v59
    %v428 = vpop.permute.xlu0 %427
    %431 = vset.pattern.permute.xlu0 0
    %432 = vperm.xlu0 %431, %v60
    %v433 = vpop.permute.xlu0 %432
    %436 = vset.pattern.permute.xlu0 0
    %437 = vperm.xlu0 %436, %v61
    %v438 = vpop.permute.xlu0 %437
    %441 = vset.pattern.permute.xlu0 0
    %442 = vperm.xlu0 %441, %v62
    %v443 = vpop.permute.xlu0 %442
    %446 = vset.pattern.permute.xlu0 0
    %447 = vperm.xlu0 %446, %v63
    %v448 = vpop.permute.xlu0 %447
    %451 = vset.pattern.permute.xlu0 0
    %452 = vperm.xlu0 %451, %v64
    %v453 = vpop.permute.xlu0 %452
    %456 = vset.pattern.permute.xlu0 0
    %457 = vperm.xlu0 %456, %v65
    %v458 = vpop.permute.xlu0 %457
    %vm460 = vcmask 523264
    %v462 = vsel %vm460, %v34, 0
    %v465 = vsel %vm460, %v35, 0
    %v468 = vsel %vm460, %v36, 0
    %v471 = vsel %vm460, %v37, 0
    %v474 = vsel %vm460, %v38, 0
    %v477 = vsel %vm460, %v39, 0
    %v480 = vsel %vm460, %v40, 0
    %v483 = vsel %vm460, %v41, 0
    %485 = vmatprep.subr.mxu0 0.0
    %486 = vmatpush1.msra.mxu0 %v83
    %487 = vmatprep.subr.mxu0 0.0
    %488 = vmatpush1.msra.mxu0 %v84
    %489 = vmatprep.subr.mxu0 0.0
    %490 = vmatpush1.msra.mxu0 %v85
    %491 = vmatprep.subr.mxu0 0.0
    %492 = vmatpush1.msra.mxu0 %v86
    %493 = vmatprep.subr.mxu0 0.0
    %494 = vmatpush1.msra.mxu0 %v87
    %495 = vmatprep.subr.mxu0 0.0
    %496 = vmatpush1.msra.mxu0 %v88
    %497 = vmatprep.subr.mxu0 0.0
    %498 = vmatpush1.msra.mxu0 %v89
    %499 = vmatprep.subr.mxu0 0.0
    %500 = vmatpush1.msra.mxu0 %v90
    %501 = vmatprep.subr.mxu0 0.0
    %502 = vmatpush1.msra.mxu0 0.0
    %503 = vmatprep.subr.mxu0 0.0
    %504 = vmatpush1.msra.mxu0 0.0
    %505 = vmatprep.subr.mxu0 0.0
    %506 = vmatpush1.msra.mxu0 0.0
    %507 = vmatprep.subr.mxu0 0.0
    %508 = vmatpush1.msra.mxu0 0.0
    %509 = vmatprep.subr.mxu0 0.0
    %510 = vmatpush1.msra.mxu0 0.0
    %511 = vmatprep.subr.mxu0 0.0
    %512 = vmatpush1.msra.mxu0 0.0
    %513 = vmatprep.subr.mxu0 0.0
    %514 = vmatpush1.msra.mxu0 0.0
    %515 = vmatprep.subr.mxu0 0.0
    %516 = vmatpush1.msra.mxu0 0.0
    %517 = vmatprep.subr.mxu0 0.0
    %518 = vmatpush1.msra.mxu0 0.0
    %519 = vmatprep.subr.mxu0 0.0
    %520 = vmatpush1.msra.mxu0 0.0
    %521 = vmatprep.subr.mxu0 0.0
    %522 = vmatpush1.msra.mxu0 0.0
    %523 = vmatprep.subr.mxu0 0.0
    %524 = vmatpush1.msra.mxu0 0.0
    %525 = vmatprep.subr.mxu0 0.0
    %526 = vmatpush1.msra.mxu0 0.0
    %527 = vmatprep.subr.mxu0 0.0
    %528 = vmatpush1.msra.mxu0 0.0
    %529 = vmatprep.subr.mxu0 0.0
    %530 = vmatpush1.msra.mxu0 0.0
    %531 = vmatprep.subr.mxu0 0.0
    %532 = vmatpush1.msra.mxu0 0.0
    %533 = vmatprep.subr.mxu0 0.0
    %534 = vmatpush1.msra.mxu0 0.0
    %535 = vmatprep.subr.mxu0 0.0
    %536 = vmatpush1.msra.mxu0 0.0
    %537 = vmatprep.subr.mxu0 0.0
    %538 = vmatpush1.msra.mxu0 0.0
    %539 = vmatprep.subr.mxu0 0.0
    %540 = vmatpush1.msra.mxu0 0.0
    %541 = vmatprep.subr.mxu0 0.0
    %542 = vmatpush1.msra.mxu0 0.0
    %543 = vmatprep.subr.mxu0 0.0
    %544 = vmatpush1.msra.mxu0 0.0
    %545 = vmatprep.subr.mxu0 0.0
    %546 = vmatpush1.msra.mxu0 0.0
    %547 = vmatprep.subr.mxu0 0.0
    %548 = vmatpush1.msra.mxu0 0.0
    %549 = vmatprep.mubr.f32.mxu0 0.0
    %550 = vmatmul.mubr.f32.gmra.mrb[0].mxu0 %v462
    %v551 = vpop.f32.mrb[0].mxu0
    %v552 = vadd.f32 %v423, %v551
    %v553 = vpop.f32.mrb[0].mxu0
    %554 = vmatprep.mubr.f32.mxu0 0.0
    %555 = vmatmul.mubr.f32.gmra.mrb[0].mxu0 %v465
    %v556 = vpop.f32.mrb[0].mxu0
    %v557 = vadd.f32 %v428, %v556
    %v558 = vpop.f32.mrb[0].mxu0
    %559 = vmatprep.mubr.f32.mxu0 0.0
    %560 = vmatmul.mubr.f32.gmra.mrb[0].mxu0 %v468
    %v561 = vpop.f32.mrb[0].mxu0
    %v562 = vadd.f32 %v433, %v561
    %v563 = vpop.f32.mrb[0].mxu0
    %564 = vmatprep.mubr.f32.mxu0 0.0
    %565 = vmatmul.mubr.f32.gmra.mrb[0].mxu0 %v471
    %v566 = vpop.f32.mrb[0].mxu0
    %v567 = vadd.f32 %v438, %v566
    %v568 = vpop.f32.mrb[0].mxu0
    %569 = vmatprep.mubr.f32.mxu0 0.0
    %570 = vmatmul.mubr.f32.gmra.mrb[0].mxu0 %v474
    %v571 = vpop.f32.mrb[0].mxu0
    %v572 = vadd.f32 %v443, %v571
    %v573 = vpop.f32.mrb[0].mxu0
    %574 = vmatprep.mubr.f32.mxu0 0.0
    %575 = vmatmul.mubr.f32.gmra.mrb[0].mxu0 %v477
    %v576 = vpop.f32.mrb[0].mxu0
    %v577 = vadd.f32 %v448, %v576
    %v578 = vpop.f32.mrb[0].mxu0
    %579 = vmatprep.mubr.f32.mxu0 0.0
    %580 = vmatmul.mubr.f32.gmra.mrb[0].mxu0 %v480
    %v581 = vpop.f32.mrb[0].mxu0
    %v582 = vadd.f32 %v453, %v581
    %v583 = vpop.f32.mrb[0].mxu0
    %584 = vmatprep.mubr.f32.mxu0 0.0
    %585 = vmatmul.mubr.f32.gmra.mrb[0].mxu0 %v483
    %v586 = vpop.f32.mrb[0].mxu0
    %v587 = vadd.f32 %v458, %v586
    %v588 = vpop.f32.mrb[0].mxu0
    %589 = vdwg.mxu0
    %591 = vset.pattern.permute.xlu0 0
    %592 = vperm.xlu0 %591, %v66
    %v593 = vpop.permute.xlu0 %592
    %596 = vset.pattern.permute.xlu0 0
    %597 = vperm.xlu0 %596, %v67
    %v598 = vpop.permute.xlu0 %597
    %601 = vset.pattern.permute.xlu0 0
    %602 = vperm.xlu0 %601, %v68
    %v603 = vpop.permute.xlu0 %602
    %606 = vset.pattern.permute.xlu0 0
    %607 = vperm.xlu0 %606, %v69
    %v608 = vpop.permute.xlu0 %607
    %611 = vset.pattern.permute.xlu0 0
    %612 = vperm.xlu0 %611, %v70
    %v613 = vpop.permute.xlu0 %612
    %616 = vset.pattern.permute.xlu0 0
    %617 = vperm.xlu0 %616, %v71
    %v618 = vpop.permute.xlu0 %617
    %621 = vset.pattern.permute.xlu0 0
    %622 = vperm.xlu0 %621, %v72
    %v623 = vpop.permute.xlu0 %622
    %626 = vset.pattern.permute.xlu0 0
    %627 = vperm.xlu0 %626, %v73
    %v628 = vpop.permute.xlu0 %627
    %631 = vset.pattern.permute.xlu0 0
    %632 = vperm.xlu0 %631, %v74
    %v633 = vpop.permute.xlu0 %632
    %636 = vset.pattern.permute.xlu0 0
    %637 = vperm.xlu0 %636, %v75
    %v638 = vpop.permute.xlu0 %637
    %641 = vset.pattern.permute.xlu0 0
    %642 = vperm.xlu0 %641, %v76
    %v643 = vpop.permute.xlu0 %642
    %646 = vset.pattern.permute.xlu0 0
    %647 = vperm.xlu0 %646, %v77
    %v648 = vpop.permute.xlu0 %647
    %651 = vset.pattern.permute.xlu0 0
    %652 = vperm.xlu0 %651, %v78
    %v653 = vpop.permute.xlu0 %652
    %656 = vset.pattern.permute.xlu0 0
    %657 = vperm.xlu0 %656, %v79
    %v658 = vpop.permute.xlu0 %657
    %661 = vset.pattern.permute.xlu0 0
    %662 = vperm.xlu0 %661, %v80
    %v663 = vpop.permute.xlu0 %662
    %666 = vset.pattern.permute.xlu0 0
    %667 = vperm.xlu0 %666, %v81
    %v668 = vpop.permute.xlu0 %667
    %v671 = vsel %vm460, %v42, 0
    %v674 = vsel %vm460, %v43, 0
    %v677 = vsel %vm460, %v44, 0
    %v680 = vsel %vm460, %v45, 0
    %v683 = vsel %vm460, %v46, 0
    %v686 = vsel %vm460, %v47, 0
    %v689 = vsel %vm460, %v48, 0
    %v692 = vsel %vm460, %v49, 0
    %v695 = vsel %vm460, %v50, 0
    %v698 = vsel %vm460, %v51, 0
    %v701 = vsel %vm460, %v52, 0
    %v704 = vsel %vm460, %v53, 0
    %v707 = vsel %vm460, %v54, 0
    %v710 = vsel %vm460, %v55, 0
    %v713 = vsel %vm460, %v56, 0
    %v716 = vsel %vm460, %v57, 0
    %718 = vmatprep.subr.mxu0 0.0
    %719 = vmatpush1.msra.mxu0 %v91
    %720 = vmatprep.subr.mxu0 0.0
    %721 = vmatpush1.msra.mxu0 %v92
    %722 = vmatprep.subr.mxu0 0.0
    %723 = vmatpush1.msra.mxu0 %v93
    %724 = vmatprep.subr.mxu0 0.0
    %725 = vmatpush1.msra.mxu0 %v94
    %726 = vmatprep.subr.mxu0 0.0
    %727 = vmatpush1.msra.mxu0 %v95
    %728 = vmatprep.subr.mxu0 0.0
    %729 = vmatpush1.msra.mxu0 %v96
    %730 = vmatprep.subr.mxu0 0.0
    %731 = vmatpush1.msra.mxu0 %v97
    %732 = vmatprep.subr.mxu0 0.0
    %733 = vmatpush1.msra.mxu0 %v98
    %734 = vmatprep.subr.mxu0 0.0
    %735 = vmatpush1.msra.mxu0 0.0
    %736 = vmatprep.subr.mxu0 0.0
    %737 = vmatpush1.msra.mxu0 0.0
    %738 = vmatprep.subr.mxu0 0.0
    %739 = vmatpush1.msra.mxu0 0.0
    %740 = vmatprep.subr.mxu0 0.0
    %741 = vmatpush1.msra.mxu0 0.0
    %742 = vmatprep.subr.mxu0 0.0
    %743 = vmatpush1.msra.mxu0 0.0
    %744 = vmatprep.subr.mxu0 0.0
    %745 = vmatpush1.msra.mxu0 0.0
    %746 = vmatprep.subr.mxu0 0.0
    %747 = vmatpush1.msra.mxu0 0.0
    %748 = vmatprep.subr.mxu0 0.0
    %749 = vmatpush1.msra.mxu0 0.0
    %750 = vmatprep.subr.mxu0 0.0
    %751 = vmatpush1.msra.mxu0 0.0
    %752 = vmatprep.subr.mxu0 0.0
    %753 = vmatpush1.msra.mxu0 0.0
    %754 = vmatprep.subr.mxu0 0.0
    %755 = vmatpush1.msra.mxu0 0.0
    %756 = vmatprep.subr.mxu0 0.0
    %757 = vmatpush1.msra.mxu0 0.0
    %758 = vmatprep.subr.mxu0 0.0
    %759 = vmatpush1.msra.mxu0 0.0
    %760 = vmatprep.subr.mxu0 0.0
    %761 = vmatpush1.msra.mxu0 0.0
    %762 = vmatprep.subr.mxu0 0.0
    %763 = vmatpush1.msra.mxu0 0.0
    %764 = vmatprep.subr.mxu0 0.0
    %765 = vmatpush1.msra.mxu0 0.0
    %766 = vmatprep.subr.mxu0 0.0
    %767 = vmatpush1.msra.mxu0 0.0
    %768 = vmatprep.subr.mxu0 0.0
    %769 = vmatpush1.msra.mxu0 0.0
    %770 = vmatprep.subr.mxu0 0.0
    %771 = vmatpush1.msra.mxu0 0.0
    %772 = vmatprep.subr.mxu0 0.0
    %773 = vmatpush1.msra.mxu0 0.0
    %774 = vmatprep.subr.mxu0 0.0
    %775 = vmatpush1.msra.mxu0 0.0
    %776 = vmatprep.subr.mxu0 0.0
    %777 = vmatpush1.msra.mxu0 0.0
    %778 = vmatprep.subr.mxu0 0.0
    %779 = vmatpush1.msra.mxu0 0.0
    %780 = vmatprep.subr.mxu0 0.0
    %781 = vmatpush1.msra.mxu0 0.0
    %782 = vmatprep.mubr.f32.mxu0 0.0
    %783 = vmatmul.mubr.f32.gmra.mrb[0].mxu0 %v671
    %v784 = vpop.f32.mrb[0].mxu0
    %v785 = vadd.f32 %v593, %v784
    %v786 = vpop.f32.mrb[0].mxu0
    %787 = vmatprep.mubr.f32.mxu0 0.0
    %788 = vmatmul.mubr.f32.gmra.mrb[0].mxu0 %v674
    %v789 = vpop.f32.mrb[0].mxu0
    %v790 = vadd.f32 %v598, %v789
    %v791 = vpop.f32.mrb[0].mxu0
    %792 = vmatprep.mubr.f32.mxu0 0.0
    %793 = vmatmul.mubr.f32.gmra.mrb[0].mxu0 %v677
    %v794 = vpop.f32.mrb[0].mxu0
    %v795 = vadd.f32 %v603, %v794
    %v796 = vpop.f32.mrb[0].mxu0
    %797 = vmatprep.mubr.f32.mxu0 0.0
    %798 = vmatmul.mubr.f32.gmra.mrb[0].mxu0 %v680
    %v799 = vpop.f32.mrb[0].mxu0
    %v800 = vadd.f32 %v608, %v799
    %v801 = vpop.f32.mrb[0].mxu0
    %802 = vmatprep.mubr.f32.mxu0 0.0
    %803 = vmatmul.mubr.f32.gmra.mrb[0].mxu0 %v683
    %v804 = vpop.f32.mrb[0].mxu0
    %v805 = vadd.f32 %v613, %v804
    %v806 = vpop.f32.mrb[0].mxu0
    %807 = vmatprep.mubr.f32.mxu0 0.0
    %808 = vmatmul.mubr.f32.gmra.mrb[0].mxu0 %v686
    %v809 = vpop.f32.mrb[0].mxu0
    %v810 = vadd.f32 %v618, %v809
    %v811 = vpop.f32.mrb[0].mxu0
    %812 = vmatprep.mubr.f32.mxu0 0.0
    %813 = vmatmul.mubr.f32.gmra.mrb[0].mxu0 %v689
    %v814 = vpop.f32.mrb[0].mxu0
    %v815 = vadd.f32 %v623, %v814
    %v816 = vpop.f32.mrb[0].mxu0
    %817 = vmatprep.mubr.f32.mxu0 0.0
    %818 = vmatmul.mubr.f32.gmra.mrb[0].mxu0 %v692
    %v819 = vpop.f32.mrb[0].mxu0
    %v820 = vadd.f32 %v628, %v819
    %v821 = vpop.f32.mrb[0].mxu0
    %822 = vmatprep.mubr.f32.mxu0 0.0
    %823 = vmatmul.mubr.f32.gmra.mrb[0].mxu0 %v695
    %v824 = vpop.f32.mrb[0].mxu0
    %v825 = vadd.f32 %v633, %v824
    %v826 = vpop.f32.mrb[0].mxu0
    %827 = vmatprep.mubr.f32.mxu0 0.0
    %828 = vmatmul.mubr.f32.gmra.mrb[0].mxu0 %v698
    %v829 = vpop.f32.mrb[0].mxu0
    %v830 = vadd.f32 %v638, %v829
    %v831 = vpop.f32.mrb[0].mxu0
    %832 = vmatprep.mubr.f32.mxu0 0.0
    %833 = vmatmul.mubr.f32.gmra.mrb[0].mxu0 %v701
    %v834 = vpop.f32.mrb[0].mxu0
    %v835 = vadd.f32 %v643, %v834
    %v836 = vpop.f32.mrb[0].mxu0
    %837 = vmatprep.mubr.f32.mxu0 0.0
    %838 = vmatmul.mubr.f32.gmra.mrb[0].mxu0 %v704
    %v839 = vpop.f32.mrb[0].mxu0
    %v840 = vadd.f32 %v648, %v839
    %v841 = vpop.f32.mrb[0].mxu0
    %842 = vmatprep.mubr.f32.mxu0 0.0
    %843 = vmatmul.mubr.f32.gmra.mrb[0].mxu0 %v707
    %v844 = vpop.f32.mrb[0].mxu0
    %v845 = vadd.f32 %v653, %v844
    %v846 = vpop.f32.mrb[0].mxu0
    %847 = vmatprep.mubr.f32.mxu0 0.0
    %848 = vmatmul.mubr.f32.gmra.mrb[0].mxu0 %v710
    %v849 = vpop.f32.mrb[0].mxu0
    %v850 = vadd.f32 %v658, %v849
    %v851 = vpop.f32.mrb[0].mxu0
    %852 = vmatprep.mubr.f32.mxu0 0.0
    %853 = vmatmul.mubr.f32.gmra.mrb[0].mxu0 %v713
    %v854 = vpop.f32.mrb[0].mxu0
    %v855 = vadd.f32 %v663, %v854
    %v856 = vpop.f32.mrb[0].mxu0
    %857 = vmatprep.mubr.f32.mxu0 0.0
    %858 = vmatmul.mubr.f32.gmra.mrb[0].mxu0 %v716
    %v859 = vpop.f32.mrb[0].mxu0
    %v860 = vadd.f32 %v668, %v859
    %v861 = vpop.f32.mrb[0].mxu0
    %862 = vdwg.mxu0
    %863 = vxpose.xlu0.b32.start [1/16] %v552, 128
    %864 = vxpose.xlu0.b32.cont [2/16] %v557, 128
    %865 = vxpose.xlu0.b32.cont [3/16] %v562, 128
    %866 = vxpose.xlu0.b32.cont [4/16] %v567, 128
    %867 = vxpose.xlu0.b32.cont [5/16] %v572, 128
    %868 = vxpose.xlu0.b32.cont [6/16] %v577, 128
    %869 = vxpose.xlu0.b32.cont [7/16] %v582, 128
    %870 = vxpose.xlu0.b32.cont [8/16] %v587, 128
    %871 = vxpose.xlu0.b32.cont [9/16] 0.0, 128
    %872 = vxpose.xlu0.b32.cont [10/16] 0.0, 128
    %873 = vxpose.xlu0.b32.cont [11/16] 0.0, 128
    %874 = vxpose.xlu0.b32.cont [12/16] 0.0, 128
    %875 = vxpose.xlu0.b32.cont [13/16] 0.0, 128
    %876 = vxpose.xlu0.b32.cont [14/16] 0.0, 128
    %877 = vxpose.xlu0.b32.cont [15/16] 0.0, 128
    %878 = vxpose.xlu0.b32.end [16/16] 0.0, 128
    %v879 = vpop.trf.xlu0
    %v880 = vpop.trf.xlu0
    %v881 = vpop.trf.xlu0
    %v882 = vpop.trf.xlu0
    %v883 = vpop.trf.xlu0
    %v884 = vpop.trf.xlu0
    %v885 = vpop.trf.xlu0
    %v886 = vpop.trf.xlu0
    %v887 = vpop.trf.xlu0
    %v888 = vpop.trf.xlu0
    %v889 = vpop.trf.xlu0
    %v890 = vpop.trf.xlu0
    %v891 = vpop.trf.xlu0
    %v892 = vpop.trf.xlu0
    %v893 = vpop.trf.xlu0
    %v894 = vpop.trf.xlu0
    %v896 = vsel %vm460, %v879, 0
    %v899 = vsel %vm460, %v880, 0
    %901 = vmatprep.subr.mxu0 0.0
    %902 = vmatpush1.msra.mxu0 %v785
    %903 = vmatprep.subr.mxu0 0.0
    %904 = vmatpush1.msra.mxu0 %v790
    %905 = vmatprep.subr.mxu0 0.0
    %906 = vmatpush1.msra.mxu0 %v795
    %907 = vmatprep.subr.mxu0 0.0
    %908 = vmatpush1.msra.mxu0 %v800
    %909 = vmatprep.subr.mxu0 0.0
    %910 = vmatpush1.msra.mxu0 %v805
    %911 = vmatprep.subr.mxu0 0.0
    %912 = vmatpush1.msra.mxu0 %v810
    %913 = vmatprep.subr.mxu0 0.0
    %914 = vmatpush1.msra.mxu0 %v815
    %915 = vmatprep.subr.mxu0 0.0
    %916 = vmatpush1.msra.mxu0 %v820
    %917 = vmatprep.subr.mxu0 0.0
    %918 = vmatpush1.msra.mxu0 0.0
    %919 = vmatprep.subr.mxu0 0.0
    %920 = vmatpush1.msra.mxu0 0.0
    %921 = vmatprep.subr.mxu0 0.0
    %922 = vmatpush1.msra.mxu0 0.0
    %923 = vmatprep.subr.mxu0 0.0
    %924 = vmatpush1.msra.mxu0 0.0
    %925 = vmatprep.subr.mxu0 0.0
    %926 = vmatpush1.msra.mxu0 0.0
    %927 = vmatprep.subr.mxu0 0.0
    %928 = vmatpush1.msra.mxu0 0.0
    %929 = vmatprep.subr.mxu0 0.0
    %930 = vmatpush1.msra.mxu0 0.0
    %931 = vmatprep.subr.mxu0 0.0
    %932 = vmatpush1.msra.mxu0 0.0
    %933 = vmatprep.subr.mxu0 0.0
    %934 = vmatpush1.msra.mxu0 0.0
    %935 = vmatprep.subr.mxu0 0.0
    %936 = vmatpush1.msra.mxu0 0.0
    %937 = vmatprep.subr.mxu0 0.0
    %938 = vmatpush1.msra.mxu0 0.0
    %939 = vmatprep.subr.mxu0 0.0
    %940 = vmatpush1.msra.mxu0 0.0
    %941 = vmatprep.subr.mxu0 0.0
    %942 = vmatpush1.msra.mxu0 0.0
    %943 = vmatprep.subr.mxu0 0.0
    %944 = vmatpush1.msra.mxu0 0.0
    %945 = vmatprep.subr.mxu0 0.0
    %946 = vmatpush1.msra.mxu0 0.0
    %947 = vmatprep.subr.mxu0 0.0
    %948 = vmatpush1.msra.mxu0 0.0
    %949 = vmatprep.subr.mxu0 0.0
    %950 = vmatpush1.msra.mxu0 0.0
    %951 = vmatprep.subr.mxu0 0.0
    %952 = vmatpush1.msra.mxu0 0.0
    %953 = vmatprep.subr.mxu0 0.0
    %954 = vmatpush1.msra.mxu0 0.0
    %955 = vmatprep.subr.mxu0 0.0
    %956 = vmatpush1.msra.mxu0 0.0
    %957 = vmatprep.subr.mxu0 0.0
    %958 = vmatpush1.msra.mxu0 0.0
    %959 = vmatprep.subr.mxu0 0.0
    %960 = vmatpush1.msra.mxu0 0.0
    %961 = vmatprep.subr.mxu0 0.0
    %962 = vmatpush1.msra.mxu0 0.0
    %963 = vmatprep.subr.mxu0 0.0
    %964 = vmatpush1.msra.mxu0 0.0
    %965 = vmatprep.mubr.f32.mxu0 0.0
    %966 = vmatmul.mubr.f32.gmra.mrb[0].mxu0 %v896
    %v967 = vpop.f32.mrb[0].mxu0
    %v968 = vadd.f32 0.0, %v967
    %v969 = vpop.f32.mrb[0].mxu0
    %970 = vmatprep.mubr.f32.mxu0 0.0
    %971 = vmatmul.mubr.f32.gmra.mrb[0].mxu0 %v899
    %v972 = vpop.f32.mrb[0].mxu0
    %v973 = vadd.f32 0.0, %v972
    %v974 = vpop.f32.mrb[0].mxu0
    %975 = vdwg.mxu0
    %vm976 = vcmask 130048
    %v977 = vsel %vm976, %v968, -inf
    %978 = vmax.xlane.f32.xlu0 %v977
    %v979 = vpop.xlane.xlu0 %978
    %v980 = vsel %vm976, %v973, -inf
    %981 = vmax.xlane.f32.xlu0 %v980
    %v982 = vpop.xlane.xlu0 %981
    %v983 = vsub.f32 %v968, %v979
    %v984 = vsub.f32 %v973, %v982
    %v985 = vmul.f32 %v983, 1.442695
    %v986 = vpow.pop %v985
    %v987 = vmul.f32 %v984, 1.442695
    %v988 = vpow.pop %v987
    %v989 = vsel %vm976, %v986, 0.0
    %990 = vadd.xlane.f32.xlu0 %v989
    %v991 = vpop.xlane.xlu0 %990
    %v992 = vsel %vm976, %v988, 0.0
    %993 = vadd.xlane.f32.xlu0 %v992
    %v994 = vpop.xlane.xlu0 %993
    %v995 = vrcp.pop %v991
    %v996 = vmul.f32 %v986, %v995
    %v997 = vrcp.pop %v994
    %v998 = vmul.f32 %v988, %v997
    %v1001 = vrot.slane %v996, 1
    %v1002 = vrot.slane %v996, 2
    %v1003 = vrot.slane %v996, 3
    %v1004 = vrot.slane %v996, 4
    %v1005 = vrot.slane %v996, 5
    %v1006 = vrot.slane %v996, 6
    %v1007 = vrot.slane %v996, 7
    %v1008 = vrot.slane %v998, 1
    %v1009 = vrot.slane %v998, 2
    %v1010 = vrot.slane %v998, 3
    %v1011 = vrot.slane %v998, 4
    %v1012 = vrot.slane %v998, 5
    %v1013 = vrot.slane %v998, 6
    %v1014 = vrot.slane %v998, 7
    %v1031 = vmul.f32 %v389, %v996
    %v1032 = vmul.f32 %v391, %v1001
    %v1033 = vmul.f32 %v393, %v1002
    %v1034 = vmul.f32 %v395, %v1003
    %v1035 = vmul.f32 %v397, %v1004
    %v1036 = vmul.f32 %v399, %v1005
    %v1037 = vmul.f32 %v401, %v1006
    %v1038 = vmul.f32 %v403, %v1007
    %v1039 = vmul.f32 %v405, %v998
    %v1040 = vmul.f32 %v407, %v1008
    %v1041 = vmul.f32 %v409, %v1009
    %v1042 = vmul.f32 %v411, %v1010
    %v1043 = vmul.f32 %v413, %v1011
    %v1044 = vmul.f32 %v415, %v1012
    %v1045 = vmul.f32 %v417, %v1013
    %v1046 = vmul.f32 %v419, %v1014
    %v1063 = vrot.slane %v1032, 7
    %vm1064 = vcmask 1041409
    %v1065 = vsel %vm1064, %v1063, %v1031
    %v1066 = vrot.slane %v1033, 6
    %vm1067 = vcmask 1042434
    %v1068 = vsel %vm1067, %v1066, %v1065
    %v1069 = vrot.slane %v1034, 5
    %vm1070 = vcmask 1043459
    %v1071 = vsel %vm1070, %v1069, %v1068
    %v1072 = vrot.slane %v1035, 4
    %vm1073 = vcmask 1044484
    %v1074 = vsel %vm1073, %v1072, %v1071
    %v1075 = vrot.slane %v1036, 3
    %vm1076 = vcmask 1045509
    %v1077 = vsel %vm1076, %v1075, %v1074
    %v1078 = vrot.slane %v1037, 2
    %vm1079 = vcmask 1046534
    %v1080 = vsel %vm1079, %v1078, %v1077
    %v1081 = vrot.slane %v1038, 1
    %vm1082 = vcmask 1047559
    %v1083 = vsel %vm1082, %v1081, %v1080
    %v1084 = vrot.slane %v1040, 7
    %v1085 = vsel %vm1064, %v1084, %v1039
    %v1086 = vrot.slane %v1041, 6
    %v1087 = vsel %vm1067, %v1086, %v1085
    %v1088 = vrot.slane %v1042, 5
    %v1089 = vsel %vm1070, %v1088, %v1087
    %v1090 = vrot.slane %v1043, 4
    %v1091 = vsel %vm1073, %v1090, %v1089
    %v1092 = vrot.slane %v1044, 3
    %v1093 = vsel %vm1076, %v1092, %v1091
    %v1094 = vrot.slane %v1045, 2
    %v1095 = vsel %vm1079, %v1094, %v1093
    %v1096 = vrot.slane %v1046, 1
    %v1097 = vsel %vm1082, %v1096, %v1095
    %v1098 = vsel %vm976, %v1083, 0
    %v1100 = vsel %vm976, %v1097, 0
    %v1103 = vsel %vm976, %v825, 0
    %v1106 = vsel %vm976, %v830, 0
    %v1109 = vsel %vm976, %v835, 0
    %v1112 = vsel %vm976, %v840, 0
    %v1115 = vsel %vm976, %v845, 0
    %v1118 = vsel %vm976, %v850, 0
    %v1121 = vsel %vm976, %v855, 0
    %v1124 = vsel %vm976, %v860, 0
    %1126 = vmatprep.subr.mxu0 0.0
    %1127 = vmatpush1.xpose.msra.mxu0 %v1103
    %1128 = vmatprep.subr.mxu0 0.0
    %1129 = vmatpush1.xpose.msra.mxu0 %v1106
    %1130 = vmatprep.subr.mxu0 0.0
    %1131 = vmatpush1.xpose.msra.mxu0 %v1109
    %1132 = vmatprep.subr.mxu0 0.0
    %1133 = vmatpush1.xpose.msra.mxu0 %v1112
    %1134 = vmatprep.subr.mxu0 0.0
    %1135 = vmatpush1.xpose.msra.mxu0 %v1115
    %1136 = vmatprep.subr.mxu0 0.0
    %1137 = vmatpush1.xpose.msra.mxu0 %v1118
    %1138 = vmatprep.subr.mxu0 0.0
    %1139 = vmatpush1.xpose.msra.mxu0 %v1121
    %1140 = vmatprep.subr.mxu0 0.0
    %1141 = vmatpush1.xpose.msra.mxu0 %v1124
    %1142 = vmatprep.subr.mxu0 0.0
    %1143 = vmatpush1.xpose.msra.mxu0 0.0
    %1144 = vmatprep.subr.mxu0 0.0
    %1145 = vmatpush1.xpose.msra.mxu0 0.0
    %1146 = vmatprep.subr.mxu0 0.0
    %1147 = vmatpush1.xpose.msra.mxu0 0.0
    %1148 = vmatprep.subr.mxu0 0.0
    %1149 = vmatpush1.xpose.msra.mxu0 0.0
    %1150 = vmatprep.subr.mxu0 0.0
    %1151 = vmatpush1.xpose.msra.mxu0 0.0
    %1152 = vmatprep.subr.mxu0 0.0
    %1153 = vmatpush1.xpose.msra.mxu0 0.0
    %1154 = vmatprep.subr.mxu0 0.0
    %1155 = vmatpush1.xpose.msra.mxu0 0.0
    %1156 = vmatprep.subr.mxu0 0.0
    %1157 = vmatpush1.xpose.msra.mxu0 0.0
    %1158 = vmatprep.subr.mxu0 0.0
    %1159 = vmatpush1.xpose.msra.mxu0 0.0
    %1160 = vmatprep.subr.mxu0 0.0
    %1161 = vmatpush1.xpose.msra.mxu0 0.0
    %1162 = vmatprep.subr.mxu0 0.0
    %1163 = vmatpush1.xpose.msra.mxu0 0.0
    %1164 = vmatprep.subr.mxu0 0.0
    %1165 = vmatpush1.xpose.msra.mxu0 0.0
    %1166 = vmatprep.subr.mxu0 0.0
    %1167 = vmatpush1.xpose.msra.mxu0 0.0
    %1168 = vmatprep.subr.mxu0 0.0
    %1169 = vmatpush1.xpose.msra.mxu0 0.0
    %1170 = vmatprep.subr.mxu0 0.0
    %1171 = vmatpush1.xpose.msra.mxu0 0.0
    %1172 = vmatprep.subr.mxu0 0.0
    %1173 = vmatpush1.xpose.msra.mxu0 0.0
    %1174 = vmatprep.subr.mxu0 0.0
    %1175 = vmatpush1.xpose.msra.mxu0 0.0
    %1176 = vmatprep.subr.mxu0 0.0
    %1177 = vmatpush1.xpose.msra.mxu0 0.0
    %1178 = vmatprep.subr.mxu0 0.0
    %1179 = vmatpush1.xpose.msra.mxu0 0.0
    %1180 = vmatprep.subr.mxu0 0.0
    %1181 = vmatpush1.xpose.msra.mxu0 0.0
    %1182 = vmatprep.subr.mxu0 0.0
    %1183 = vmatpush1.xpose.msra.mxu0 0.0
    %1184 = vmatprep.subr.mxu0 0.0
    %1185 = vmatpush1.xpose.msra.mxu0 0.0
    %1186 = vmatprep.subr.mxu0 0.0
    %1187 = vmatpush1.xpose.msra.mxu0 0.0
    %1188 = vmatprep.subr.mxu0 0.0
    %1189 = vmatpush1.xpose.msra.mxu0 0.0
    %1190 = vmatprep.mubr.f32.mxu0 0.0
    %1191 = vmatmul.mubr.f32.gmra.mrb[0].mxu0 %v1098
    %v1192 = vpop.f32.mrb[0].mxu0
    %v1193 = vadd.f32 0.0, %v1192
    %v1194 = vpop.f32.mrb[0].mxu0
    %1195 = vmatprep.mubr.f32.mxu0 0.0
    %1196 = vmatmul.mubr.f32.gmra.mrb[0].mxu0 %v1100
    %v1197 = vpop.f32.mrb[0].mxu0
    %v1198 = vadd.f32 0.0, %v1197
    %v1199 = vpop.f32.mrb[0].mxu0
    %1200 = vdwg.mxu0
    %v1201 = vstv %s82
    %v1202 = vmul.f32 %v1201, %v1193
    %v1203 = vmul.f32 %v1201, %v1198
    %v1204 = vld [vmem:[%s3] sm:$0xff]
    %v1205 = vld [vmem:[%s3 + $0x8] sm:$0xff]
    %v1206 = vadd.f32 %v1202, %v1204
    %v1207 = vadd.f32 %v1203, %v1205
    %1208 = vst.msk [vmem:[#allocation3] sm:$0xff] %vm460, %v1206
    %1209 = vst.msk [vmem:[#allocation3 + $0x8] sm:$0xff] %vm460, %v1207
    %s1210 = scalar_lea.vmem %s0, 64
    %v1211 = vld [vmem:[%s1210] sm:$0xff]
    %v1212 = vld [vmem:[%s1210 + $0x8] sm:$0xff]
    %v1213 = vld [vmem:[%s1210 + $0x10] sm:$0xff]
    %v1214 = vld [vmem:[%s1210 + $0x18] sm:$0xff]
    %v1215 = vld [vmem:[%s1210 + $0x20] sm:$0xff]
    %v1216 = vld [vmem:[%s1210 + $0x28] sm:$0xff]
    %v1217 = vld [vmem:[%s1210 + $0x30] sm:$0xff]
    %v1218 = vld [vmem:[%s1210 + $0x38] sm:$0xff]
    %s1219 = scalar_lea.vmem %s2, 64
    %v1220 = vld [vmem:[%s1219] sm:$0xff]
    %v1221 = vld [vmem:[%s1219 + $0x8] sm:$0xff]
    %v1222 = vld [vmem:[%s1219 + $0x10] sm:$0xff]
    %v1223 = vld [vmem:[%s1219 + $0x18] sm:$0xff]
    %v1224 = vld [vmem:[%s1219 + $0x20] sm:$0xff]
    %v1225 = vld [vmem:[%s1219 + $0x28] sm:$0xff]
    %v1226 = vld [vmem:[%s1219 + $0x30] sm:$0xff]
    %v1227 = vld [vmem:[%s1219 + $0x38] sm:$0xff]
    %s1228 = scalar_lea.vmem %s1, 64
    %v1229 = vld [vmem:[%s1228] sm:$0xf]
    %v1230 = vld [vmem:[%s1228 + $0x4] sm:$0xf]
    %v1231 = vld [vmem:[%s1228 + $0x8] sm:$0xf]
    %v1232 = vld [vmem:[%s1228 + $0xc] sm:$0xf]
    %v1233 = vld [vmem:[%s1228 + $0x10] sm:$0xf]
    %v1234 = vld [vmem:[%s1228 + $0x14] sm:$0xf]
    %v1235 = vld [vmem:[%s1228 + $0x18] sm:$0xf]
    %v1236 = vld [vmem:[%s1228 + $0x1c] sm:$0xf]
    %v1237 = vld [vmem:[%s1228 + $0x20] sm:$0xf]
    %v1238 = vld [vmem:[%s1228 + $0x24] sm:$0xf]
    %v1239 = vld [vmem:[%s1228 + $0x28] sm:$0xf]
    %v1240 = vld [vmem:[%s1228 + $0x2c] sm:$0xf]
    %v1241 = vld [vmem:[%s1228 + $0x30] sm:$0xf]
    %v1242 = vld [vmem:[%s1228 + $0x34] sm:$0xf]
    %v1243 = vld [vmem:[%s1228 + $0x38] sm:$0xf]
    %v1244 = vld [vmem:[%s1228 + $0x3c] sm:$0xf]
    %v1245 = vsel %vm115, %v1229, -inf
    %v1246 = vrot.slane %v1245, 4
    %v1247 = vmax.f32 %v1245, %v1246
    %v1248 = vrot.slane %v1247, 2
    %v1249 = vmax.f32 %v1247, %v1248
    %v1250 = vrot.slane %v1249, 1
    %v1251 = vmax.f32 %v1249, %v1250
    %v1252 = vsel %vm115, %v1230, -inf
    %v1253 = vrot.slane %v1252, 4
    %v1254 = vmax.f32 %v1252, %v1253
    %v1255 = vrot.slane %v1254, 2
    %v1256 = vmax.f32 %v1254, %v1255
    %v1257 = vrot.slane %v1256, 1
    %v1258 = vmax.f32 %v1256, %v1257
    %v1259 = vsel %vm115, %v1231, -inf
    %v1260 = vrot.slane %v1259, 4
    %v1261 = vmax.f32 %v1259, %v1260
    %v1262 = vrot.slane %v1261, 2
    %v1263 = vmax.f32 %v1261, %v1262
    %v1264 = vrot.slane %v1263, 1
    %v1265 = vmax.f32 %v1263, %v1264
    %v1266 = vsel %vm115, %v1232, -inf
    %v1267 = vrot.slane %v1266, 4
    %v1268 = vmax.f32 %v1266, %v1267
    %v1269 = vrot.slane %v1268, 2
    %v1270 = vmax.f32 %v1268, %v1269
    %v1271 = vrot.slane %v1270, 1
    %v1272 = vmax.f32 %v1270, %v1271
    %v1273 = vsel %vm115, %v1233, -inf
    %v1274 = vrot.slane %v1273, 4
    %v1275 = vmax.f32 %v1273, %v1274
    %v1276 = vrot.slane %v1275, 2
    %v1277 = vmax.f32 %v1275, %v1276
    %v1278 = vrot.slane %v1277, 1
    %v1279 = vmax.f32 %v1277, %v1278
    %v1280 = vsel %vm115, %v1234, -inf
    %v1281 = vrot.slane %v1280, 4
    %v1282 = vmax.f32 %v1280, %v1281
    %v1283 = vrot.slane %v1282, 2
    %v1284 = vmax.f32 %v1282, %v1283
    %v1285 = vrot.slane %v1284, 1
    %v1286 = vmax.f32 %v1284, %v1285
    %v1287 = vsel %vm115, %v1235, -inf
    %v1288 = vrot.slane %v1287, 4
    %v1289 = vmax.f32 %v1287, %v1288
    %v1290 = vrot.slane %v1289, 2
    %v1291 = vmax.f32 %v1289, %v1290
    %v1292 = vrot.slane %v1291, 1
    %v1293 = vmax.f32 %v1291, %v1292
    %v1294 = vsel %vm115, %v1236, -inf
    %v1295 = vrot.slane %v1294, 4
    %v1296 = vmax.f32 %v1294, %v1295
    %v1297 = vrot.slane %v1296, 2
    %v1298 = vmax.f32 %v1296, %v1297
    %v1299 = vrot.slane %v1298, 1
    %v1300 = vmax.f32 %v1298, %v1299
    %v1301 = vsel %vm115, %v1237, -inf
    %v1302 = vrot.slane %v1301, 4
    %v1303 = vmax.f32 %v1301, %v1302
    %v1304 = vrot.slane %v1303, 2
    %v1305 = vmax.f32 %v1303, %v1304
    %v1306 = vrot.slane %v1305, 1
    %v1307 = vmax.f32 %v1305, %v1306
    %v1308 = vsel %vm115, %v1238, -inf
    %v1309 = vrot.slane %v1308, 4
    %v1310 = vmax.f32 %v1308, %v1309
    %v1311 = vrot.slane %v1310, 2
    %v1312 = vmax.f32 %v1310, %v1311
    %v1313 = vrot.slane %v1312, 1
    %v1314 = vmax.f32 %v1312, %v1313
    %v1315 = vsel %vm115, %v1239, -inf
    %v1316 = vrot.slane %v1315, 4
    %v1317 = vmax.f32 %v1315, %v1316
    %v1318 = vrot.slane %v1317, 2
    %v1319 = vmax.f32 %v1317, %v1318
    %v1320 = vrot.slane %v1319, 1
    %v1321 = vmax.f32 %v1319, %v1320
    %v1322 = vsel %vm115, %v1240, -inf
    %v1323 = vrot.slane %v1322, 4
    %v1324 = vmax.f32 %v1322, %v1323
    %v1325 = vrot.slane %v1324, 2
    %v1326 = vmax.f32 %v1324, %v1325
    %v1327 = vrot.slane %v1326, 1
    %v1328 = vmax.f32 %v1326, %v1327
    %v1329 = vsel %vm115, %v1241, -inf
    %v1330 = vrot.slane %v1329, 4
    %v1331 = vmax.f32 %v1329, %v1330
    %v1332 = vrot.slane %v1331, 2
    %v1333 = vmax.f32 %v1331, %v1332
    %v1334 = vrot.slane %v1333, 1
    %v1335 = vmax.f32 %v1333, %v1334
    %v1336 = vsel %vm115, %v1242, -inf
    %v1337 = vrot.slane %v1336, 4
    %v1338 = vmax.f32 %v1336, %v1337
    %v1339 = vrot.slane %v1338, 2
    %v1340 = vmax.f32 %v1338, %v1339
    %v1341 = vrot.slane %v1340, 1
    %v1342 = vmax.f32 %v1340, %v1341
    %v1343 = vsel %vm115, %v1243, -inf
    %v1344 = vrot.slane %v1343, 4
    %v1345 = vmax.f32 %v1343, %v1344
    %v1346 = vrot.slane %v1345, 2
    %v1347 = vmax.f32 %v1345, %v1346
    %v1348 = vrot.slane %v1347, 1
    %v1349 = vmax.f32 %v1347, %v1348
    %v1350 = vsel %vm115, %v1244, -inf
    %v1351 = vrot.slane %v1350, 4
    %v1352 = vmax.f32 %v1350, %v1351
    %v1353 = vrot.slane %v1352, 2
    %v1354 = vmax.f32 %v1352, %v1353
    %v1355 = vrot.slane %v1354, 1
    %v1356 = vmax.f32 %v1354, %v1355
    %v1357 = vsub.f32 %v1229, %v1251
    %v1358 = vsub.f32 %v1230, %v1258
    %v1359 = vsub.f32 %v1231, %v1265
    %v1360 = vsub.f32 %v1232, %v1272
    %v1361 = vsub.f32 %v1233, %v1279
    %v1362 = vsub.f32 %v1234, %v1286
    %v1363 = vsub.f32 %v1235, %v1293
    %v1364 = vsub.f32 %v1236, %v1300
    %v1365 = vsub.f32 %v1237, %v1307
    %v1366 = vsub.f32 %v1238, %v1314
    %v1367 = vsub.f32 %v1239, %v1321
    %v1368 = vsub.f32 %v1240, %v1328
    %v1369 = vsub.f32 %v1241, %v1335
    %v1370 = vsub.f32 %v1242, %v1342
    %v1371 = vsub.f32 %v1243, %v1349
    %v1372 = vsub.f32 %v1244, %v1356
    %v1373 = vmul.f32 %v1357, 1.442695
    %v1374 = vpow.pop %v1373
    %v1375 = vmul.f32 %v1358, 1.442695
    %v1376 = vpow.pop %v1375
    %v1377 = vmul.f32 %v1359, 1.442695
    %v1378 = vpow.pop %v1377
    %v1379 = vmul.f32 %v1360, 1.442695
    %v1380 = vpow.pop %v1379
    %v1381 = vmul.f32 %v1361, 1.442695
    %v1382 = vpow.pop %v1381
    %v1383 = vmul.f32 %v1362, 1.442695
    %v1384 = vpow.pop %v1383
    %v1385 = vmul.f32 %v1363, 1.442695
    %v1386 = vpow.pop %v1385
    %v1387 = vmul.f32 %v1364, 1.442695
    %v1388 = vpow.pop %v1387
    %v1389 = vmul.f32 %v1365, 1.442695
    %v1390 = vpow.pop %v1389
    %v1391 = vmul.f32 %v1366, 1.442695
    %v1392 = vpow.pop %v1391
    %v1393 = vmul.f32 %v1367, 1.442695
    %v1394 = vpow.pop %v1393
    %v1395 = vmul.f32 %v1368, 1.442695
    %v1396 = vpow.pop %v1395
    %v1397 = vmul.f32 %v1369, 1.442695
    %v1398 = vpow.pop %v1397
    %v1399 = vmul.f32 %v1370, 1.442695
    %v1400 = vpow.pop %v1399
    %v1401 = vmul.f32 %v1371, 1.442695
    %v1402 = vpow.pop %v1401
    %v1403 = vmul.f32 %v1372, 1.442695
    %v1404 = vpow.pop %v1403
    %v1405 = vsel %vm115, %v1374, 0.0
    %v1406 = vrot.slane %v1405, 4
    %v1407 = vadd.f32 %v1405, %v1406
    %v1408 = vrot.slane %v1407, 2
    %v1409 = vadd.f32 %v1407, %v1408
    %v1410 = vrot.slane %v1409, 1
    %v1411 = vadd.f32 %v1409, %v1410
    %v1412 = vsel %vm115, %v1376, 0.0
    %v1413 = vrot.slane %v1412, 4
    %v1414 = vadd.f32 %v1412, %v1413
    %v1415 = vrot.slane %v1414, 2
    %v1416 = vadd.f32 %v1414, %v1415
    %v1417 = vrot.slane %v1416, 1
    %v1418 = vadd.f32 %v1416, %v1417
    %v1419 = vsel %vm115, %v1378, 0.0
    %v1420 = vrot.slane %v1419, 4
    %v1421 = vadd.f32 %v1419, %v1420
    %v1422 = vrot.slane %v1421, 2
    %v1423 = vadd.f32 %v1421, %v1422
    %v1424 = vrot.slane %v1423, 1
    %v1425 = vadd.f32 %v1423, %v1424
    %v1426 = vsel %vm115, %v1380, 0.0
    %v1427 = vrot.slane %v1426, 4
    %v1428 = vadd.f32 %v1426, %v1427
    %v1429 = vrot.slane %v1428, 2
    %v1430 = vadd.f32 %v1428, %v1429
    %v1431 = vrot.slane %v1430, 1
    %v1432 = vadd.f32 %v1430, %v1431
    %v1433 = vsel %vm115, %v1382, 0.0
    %v1434 = vrot.slane %v1433, 4
    %v1435 = vadd.f32 %v1433, %v1434
    %v1436 = vrot.slane %v1435, 2
    %v1437 = vadd.f32 %v1435, %v1436
    %v1438 = vrot.slane %v1437, 1
    %v1439 = vadd.f32 %v1437, %v1438
    %v1440 = vsel %vm115, %v1384, 0.0
    %v1441 = vrot.slane %v1440, 4
    %v1442 = vadd.f32 %v1440, %v1441
    %v1443 = vrot.slane %v1442, 2
    %v1444 = vadd.f32 %v1442, %v1443
    %v1445 = vrot.slane %v1444, 1
    %v1446 = vadd.f32 %v1444, %v1445
    %v1447 = vsel %vm115, %v1386, 0.0
    %v1448 = vrot.slane %v1447, 4
    %v1449 = vadd.f32 %v1447, %v1448
    %v1450 = vrot.slane %v1449, 2
    %v1451 = vadd.f32 %v1449, %v1450
    %v1452 = vrot.slane %v1451, 1
    %v1453 = vadd.f32 %v1451, %v1452
    %v1454 = vsel %vm115, %v1388, 0.0
    %v1455 = vrot.slane %v1454, 4
    %v1456 = vadd.f32 %v1454, %v1455
    %v1457 = vrot.slane %v1456, 2
    %v1458 = vadd.f32 %v1456, %v1457
    %v1459 = vrot.slane %v1458, 1
    %v1460 = vadd.f32 %v1458, %v1459
    %v1461 = vsel %vm115, %v1390, 0.0
    %v1462 = vrot.slane %v1461, 4
    %v1463 = vadd.f32 %v1461, %v1462
    %v1464 = vrot.slane %v1463, 2
    %v1465 = vadd.f32 %v1463, %v1464
    %v1466 = vrot.slane %v1465, 1
    %v1467 = vadd.f32 %v1465, %v1466
    %v1468 = vsel %vm115, %v1392, 0.0
    %v1469 = vrot.slane %v1468, 4
    %v1470 = vadd.f32 %v1468, %v1469
    %v1471 = vrot.slane %v1470, 2
    %v1472 = vadd.f32 %v1470, %v1471
    %v1473 = vrot.slane %v1472, 1
    %v1474 = vadd.f32 %v1472, %v1473
    %v1475 = vsel %vm115, %v1394, 0.0
    %v1476 = vrot.slane %v1475, 4
    %v1477 = vadd.f32 %v1475, %v1476
    %v1478 = vrot.slane %v1477, 2
    %v1479 = vadd.f32 %v1477, %v1478
    %v1480 = vrot.slane %v1479, 1
    %v1481 = vadd.f32 %v1479, %v1480
    %v1482 = vsel %vm115, %v1396, 0.0
    %v1483 = vrot.slane %v1482, 4
    %v1484 = vadd.f32 %v1482, %v1483
    %v1485 = vrot.slane %v1484, 2
    %v1486 = vadd.f32 %v1484, %v1485
    %v1487 = vrot.slane %v1486, 1
    %v1488 = vadd.f32 %v1486, %v1487
    %v1489 = vsel %vm115, %v1398, 0.0
    %v1490 = vrot.slane %v1489, 4
    %v1491 = vadd.f32 %v1489, %v1490
    %v1492 = vrot.slane %v1491, 2
    %v1493 = vadd.f32 %v1491, %v1492
    %v1494 = vrot.slane %v1493, 1
    %v1495 = vadd.f32 %v1493, %v1494
    %v1496 = vsel %vm115, %v1400, 0.0
    %v1497 = vrot.slane %v1496, 4
    %v1498 = vadd.f32 %v1496, %v1497
    %v1499 = vrot.slane %v1498, 2
    %v1500 = vadd.f32 %v1498, %v1499
    %v1501 = vrot.slane %v1500, 1
    %v1502 = vadd.f32 %v1500, %v1501
    %v1503 = vsel %vm115, %v1402, 0.0
    %v1504 = vrot.slane %v1503, 4
    %v1505 = vadd.f32 %v1503, %v1504
    %v1506 = vrot.slane %v1505, 2
    %v1507 = vadd.f32 %v1505, %v1506
    %v1508 = vrot.slane %v1507, 1
    %v1509 = vadd.f32 %v1507, %v1508
    %v1510 = vsel %vm115, %v1404, 0.0
    %v1511 = vrot.slane %v1510, 4
    %v1512 = vadd.f32 %v1510, %v1511
    %v1513 = vrot.slane %v1512, 2
    %v1514 = vadd.f32 %v1512, %v1513
    %v1515 = vrot.slane %v1514, 1
    %v1516 = vadd.f32 %v1514, %v1515
    %v1517 = vrcp.pop %v1411
    %v1518 = vmul.f32 1.0, %v1517
    %v1519 = vrcp.pop %v1418
    %v1520 = vmul.f32 1.0, %v1519
    %v1521 = vrcp.pop %v1425
    %v1522 = vmul.f32 1.0, %v1521
    %v1523 = vrcp.pop %v1432
    %v1524 = vmul.f32 1.0, %v1523
    %v1525 = vrcp.pop %v1439
    %v1526 = vmul.f32 1.0, %v1525
    %v1527 = vrcp.pop %v1446
    %v1528 = vmul.f32 1.0, %v1527
    %v1529 = vrcp.pop %v1453
    %v1530 = vmul.f32 1.0, %v1529
    %v1531 = vrcp.pop %v1460
    %v1532 = vmul.f32 1.0, %v1531
    %v1533 = vrcp.pop %v1467
    %v1534 = vmul.f32 1.0, %v1533
    %v1535 = vrcp.pop %v1474
    %v1536 = vmul.f32 1.0, %v1535
    %v1537 = vrcp.pop %v1481
    %v1538 = vmul.f32 1.0, %v1537
    %v1539 = vrcp.pop %v1488
    %v1540 = vmul.f32 1.0, %v1539
    %v1541 = vrcp.pop %v1495
    %v1542 = vmul.f32 1.0, %v1541
    %v1543 = vrcp.pop %v1502
    %v1544 = vmul.f32 1.0, %v1543
    %v1545 = vrcp.pop %v1509
    %v1546 = vmul.f32 1.0, %v1545
    %v1547 = vrcp.pop %v1516
    %v1548 = vmul.f32 1.0, %v1547
    %1549 = vmatprep.subr.mxu0 0.0
    %1550 = vmatpush1.msra.mxu0 %v1211
    %1551 = vmatprep.subr.mxu0 0.0
    %1552 = vmatpush1.msra.mxu0 %v1212
    %1553 = vmatprep.subr.mxu0 0.0
    %1554 = vmatpush1.msra.mxu0 %v1213
    %1555 = vmatprep.subr.mxu0 0.0
    %1556 = vmatpush1.msra.mxu0 %v1214
    %1557 = vmatprep.subr.mxu0 0.0
    %1558 = vmatpush1.msra.mxu0 %v1215
    %1559 = vmatprep.subr.mxu0 0.0
    %1560 = vmatpush1.msra.mxu0 %v1216
    %1561 = vmatprep.subr.mxu0 0.0
    %1562 = vmatpush1.msra.mxu0 %v1217
    %1563 = vmatprep.subr.mxu0 0.0
    %1564 = vmatpush1.msra.mxu0 %v1218
    %1565 = vmatprep.subr.mxu0 0.0
    %1566 = vmatpush1.msra.mxu0 0.0
    %1567 = vmatprep.subr.mxu0 0.0
    %1568 = vmatpush1.msra.mxu0 0.0
    %1569 = vmatprep.subr.mxu0 0.0
    %1570 = vmatpush1.msra.mxu0 0.0
    %1571 = vmatprep.subr.mxu0 0.0
    %1572 = vmatpush1.msra.mxu0 0.0
    %1573 = vmatprep.subr.mxu0 0.0
    %1574 = vmatpush1.msra.mxu0 0.0
    %1575 = vmatprep.subr.mxu0 0.0
    %1576 = vmatpush1.msra.mxu0 0.0
    %1577 = vmatprep.subr.mxu0 0.0
    %1578 = vmatpush1.msra.mxu0 0.0
    %1579 = vmatprep.subr.mxu0 0.0
    %1580 = vmatpush1.msra.mxu0 0.0
    %1581 = vmatprep.subr.mxu0 0.0
    %1582 = vmatpush1.msra.mxu0 0.0
    %1583 = vmatprep.subr.mxu0 0.0
    %1584 = vmatpush1.msra.mxu0 0.0
    %1585 = vmatprep.subr.mxu0 0.0
    %1586 = vmatpush1.msra.mxu0 0.0
    %1587 = vmatprep.subr.mxu0 0.0
    %1588 = vmatpush1.msra.mxu0 0.0
    %1589 = vmatprep.subr.mxu0 0.0
    %1590 = vmatpush1.msra.mxu0 0.0
    %1591 = vmatprep.subr.mxu0 0.0
    %1592 = vmatpush1.msra.mxu0 0.0
    %1593 = vmatprep.subr.mxu0 0.0
    %1594 = vmatpush1.msra.mxu0 0.0
    %1595 = vmatprep.subr.mxu0 0.0
    %1596 = vmatpush1.msra.mxu0 0.0
    %1597 = vmatprep.subr.mxu0 0.0
    %1598 = vmatpush1.msra.mxu0 0.0
    %1599 = vmatprep.subr.mxu0 0.0
    %1600 = vmatpush1.msra.mxu0 0.0
    %1601 = vmatprep.subr.mxu0 0.0
    %1602 = vmatpush1.msra.mxu0 0.0
    %1603 = vmatprep.subr.mxu0 0.0
    %1604 = vmatpush1.msra.mxu0 0.0
    %1605 = vmatprep.subr.mxu0 0.0
    %1606 = vmatpush1.msra.mxu0 0.0
    %1607 = vmatprep.subr.mxu0 0.0
    %1608 = vmatpush1.msra.mxu0 0.0
    %1609 = vmatprep.subr.mxu0 0.0
    %1610 = vmatpush1.msra.mxu0 0.0
    %1611 = vmatprep.subr.mxu0 0.0
    %1612 = vmatpush1.msra.mxu0 0.0
    %1613 = vmatprep.mubr.f32.mxu0 0.0
    %1614 = vmatmul.mubr.f32.gmra.mrb[0].mxu0 %v462
    %v1615 = vpop.f32.mrb[0].mxu0
    %v1616 = vadd.f32 %v423, %v1615
    %v1617 = vpop.f32.mrb[0].mxu0
    %1618 = vmatprep.mubr.f32.mxu0 0.0
    %1619 = vmatmul.mubr.f32.gmra.mrb[0].mxu0 %v465
    %v1620 = vpop.f32.mrb[0].mxu0
    %v1621 = vadd.f32 %v428, %v1620
    %v1622 = vpop.f32.mrb[0].mxu0
    %1623 = vmatprep.mubr.f32.mxu0 0.0
    %1624 = vmatmul.mubr.f32.gmra.mrb[0].mxu0 %v468
    %v1625 = vpop.f32.mrb[0].mxu0
    %v1626 = vadd.f32 %v433, %v1625
    %v1627 = vpop.f32.mrb[0].mxu0
    %1628 = vmatprep.mubr.f32.mxu0 0.0
    %1629 = vmatmul.mubr.f32.gmra.mrb[0].mxu0 %v471
    %v1630 = vpop.f32.mrb[0].mxu0
    %v1631 = vadd.f32 %v438, %v1630
    %v1632 = vpop.f32.mrb[0].mxu0
    %1633 = vmatprep.mubr.f32.mxu0 0.0
    %1634 = vmatmul.mubr.f32.gmra.mrb[0].mxu0 %v474
    %v1635 = vpop.f32.mrb[0].mxu0
    %v1636 = vadd.f32 %v443, %v1635
    %v1637 = vpop.f32.mrb[0].mxu0
    %1638 = vmatprep.mubr.f32.mxu0 0.0
    %1639 = vmatmul.mubr.f32.gmra.mrb[0].mxu0 %v477
    %v1640 = vpop.f32.mrb[0].mxu0
    %v1641 = vadd.f32 %v448, %v1640
    %v1642 = vpop.f32.mrb[0].mxu0
    %1643 = vmatprep.mubr.f32.mxu0 0.0
    %1644 = vmatmul.mubr.f32.gmra.mrb[0].mxu0 %v480
    %v1645 = vpop.f32.mrb[0].mxu0
    %v1646 = vadd.f32 %v453, %v1645
    %v1647 = vpop.f32.mrb[0].mxu0
    %1648 = vmatprep.mubr.f32.mxu0 0.0
    %1649 = vmatmul.mubr.f32.gmra.mrb[0].mxu0 %v483
    %v1650 = vpop.f32.mrb[0].mxu0
    %v1651 = vadd.f32 %v458, %v1650
    %v1652 = vpop.f32.mrb[0].mxu0
    %1653 = vdwg.mxu0
    %1654 = vmatprep.subr.mxu0 0.0
    %1655 = vmatpush1.msra.mxu0 %v1220
    %1656 = vmatprep.subr.mxu0 0.0
    %1657 = vmatpush1.msra.mxu0 %v1221
    %1658 = vmatprep.subr.mxu0 0.0
    %1659 = vmatpush1.msra.mxu0 %v1222
    %1660 = vmatprep.subr.mxu0 0.0
    %1661 = vmatpush1.msra.mxu0 %v1223
    %1662 = vmatprep.subr.mxu0 0.0
    %1663 = vmatpush1.msra.mxu0 %v1224
    %1664 = vmatprep.subr.mxu0 0.0
    %1665 = vmatpush1.msra.mxu0 %v1225
    %1666 = vmatprep.subr.mxu0 0.0
    %1667 = vmatpush1.msra.mxu0 %v1226
    %1668 = vmatprep.subr.mxu0 0.0
    %1669 = vmatpush1.msra.mxu0 %v1227
    %1670 = vmatprep.subr.mxu0 0.0
    %1671 = vmatpush1.msra.mxu0 0.0
    %1672 = vmatprep.subr.mxu0 0.0
    %1673 = vmatpush1.msra.mxu0 0.0
    %1674 = vmatprep.subr.mxu0 0.0
    %1675 = vmatpush1.msra.mxu0 0.0
    %1676 = vmatprep.subr.mxu0 0.0
    %1677 = vmatpush1.msra.mxu0 0.0
    %1678 = vmatprep.subr.mxu0 0.0
    %1679 = vmatpush1.msra.mxu0 0.0
    %1680 = vmatprep.subr.mxu0 0.0
    %1681 = vmatpush1.msra.mxu0 0.0
    %1682 = vmatprep.subr.mxu0 0.0
    %1683 = vmatpush1.msra.mxu0 0.0
    %1684 = vmatprep.subr.mxu0 0.0
    %1685 = vmatpush1.msra.mxu0 0.0
    %1686 = vmatprep.subr.mxu0 0.0
    %1687 = vmatpush1.msra.mxu0 0.0
    %1688 = vmatprep.subr.mxu0 0.0
    %1689 = vmatpush1.msra.mxu0 0.0
    %1690 = vmatprep.subr.mxu0 0.0
    %1691 = vmatpush1.msra.mxu0 0.0
    %1692 = vmatprep.subr.mxu0 0.0
    %1693 = vmatpush1.msra.mxu0 0.0
    %1694 = vmatprep.subr.mxu0 0.0
    %1695 = vmatpush1.msra.mxu0 0.0
    %1696 = vmatprep.subr.mxu0 0.0
    %1697 = vmatpush1.msra.mxu0 0.0
    %1698 = vmatprep.subr.mxu0 0.0
    %1699 = vmatpush1.msra.mxu0 0.0
    %1700 = vmatprep.subr.mxu0 0.0
    %1701 = vmatpush1.msra.mxu0 0.0
    %1702 = vmatprep.subr.mxu0 0.0
    %1703 = vmatpush1.msra.mxu0 0.0
    %1704 = vmatprep.subr.mxu0 0.0
    %1705 = vmatpush1.msra.mxu0 0.0
    %1706 = vmatprep.subr.mxu0 0.0
    %1707 = vmatpush1.msra.mxu0 0.0
    %1708 = vmatprep.subr.mxu0 0.0
    %1709 = vmatpush1.msra.mxu0 0.0
    %1710 = vmatprep.subr.mxu0 0.0
    %1711 = vmatpush1.msra.mxu0 0.0
    %1712 = vmatprep.subr.mxu0 0.0
    %1713 = vmatpush1.msra.mxu0 0.0
    %1714 = vmatprep.subr.mxu0 0.0
    %1715 = vmatpush1.msra.mxu0 0.0
    %1716 = vmatprep.subr.mxu0 0.0
    %1717 = vmatpush1.msra.mxu0 0.0
    %1718 = vmatprep.mubr.f32.mxu0 0.0
    %1719 = vmatmul.mubr.f32.gmra.mrb[0].mxu0 %v671
    %v1720 = vpop.f32.mrb[0].mxu0
    %v1721 = vadd.f32 %v593, %v1720
    %v1722 = vpop.f32.mrb[0].mxu0
    %1723 = vmatprep.mubr.f32.mxu0 0.0
    %1724 = vmatmul.mubr.f32.gmra.mrb[0].mxu0 %v674
    %v1725 = vpop.f32.mrb[0].mxu0
    %v1726 = vadd.f32 %v598, %v1725
    %v1727 = vpop.f32.mrb[0].mxu0
    %1728 = vmatprep.mubr.f32.mxu0 0.0
    %1729 = vmatmul.mubr.f32.gmra.mrb[0].mxu0 %v677
    %v1730 = vpop.f32.mrb[0].mxu0
    %v1731 = vadd.f32 %v603, %v1730
    %v1732 = vpop.f32.mrb[0].mxu0
    %1733 = vmatprep.mubr.f32.mxu0 0.0
    %1734 = vmatmul.mubr.f32.gmra.mrb[0].mxu0 %v680
    %v1735 = vpop.f32.mrb[0].mxu0
    %v1736 = vadd.f32 %v608, %v1735
    %v1737 = vpop.f32.mrb[0].mxu0
    %1738 = vmatprep.mubr.f32.mxu0 0.0
    %1739 = vmatmul.mubr.f32.gmra.mrb[0].mxu0 %v683
    %v1740 = vpop.f32.mrb[0].mxu0
    %v1741 = vadd.f32 %v613, %v1740
    %v1742 = vpop.f32.mrb[0].mxu0
    %1743 = vmatprep.mubr.f32.mxu0 0.0
    %1744 = vmatmul.mubr.f32.gmra.mrb[0].mxu0 %v686
    %v1745 = vpop.f32.mrb[0].mxu0
    %v1746 = vadd.f32 %v618, %v1745
    %v1747 = vpop.f32.mrb[0].mxu0
    %1748 = vmatprep.mubr.f32.mxu0 0.0
    %1749 = vmatmul.mubr.f32.gmra.mrb[0].mxu0 %v689
    %v1750 = vpop.f32.mrb[0].mxu0
    %v1751 = vadd.f32 %v623, %v1750
    %v1752 = vpop.f32.mrb[0].mxu0
    %1753 = vmatprep.mubr.f32.mxu0 0.0
    %1754 = vmatmul.mubr.f32.gmra.mrb[0].mxu0 %v692
    %v1755 = vpop.f32.mrb[0].mxu0
    %v1756 = vadd.f32 %v628, %v1755
    %v1757 = vpop.f32.mrb[0].mxu0
    %1758 = vmatprep.mubr.f32.mxu0 0.0
    %1759 = vmatmul.mubr.f32.gmra.mrb[0].mxu0 %v695
    %v1760 = vpop.f32.mrb[0].mxu0
    %v1761 = vadd.f32 %v633, %v1760
    %v1762 = vpop.f32.mrb[0].mxu0
    %1763 = vmatprep.mubr.f32.mxu0 0.0
    %1764 = vmatmul.mubr.f32.gmra.mrb[0].mxu0 %v698
    %v1765 = vpop.f32.mrb[0].mxu0
    %v1766 = vadd.f32 %v638, %v1765
    %v1767 = vpop.f32.mrb[0].mxu0
    %1768 = vmatprep.mubr.f32.mxu0 0.0
    %1769 = vmatmul.mubr.f32.gmra.mrb[0].mxu0 %v701
    %v1770 = vpop.f32.mrb[0].mxu0
    %v1771 = vadd.f32 %v643, %v1770
    %v1772 = vpop.f32.mrb[0].mxu0
    %1773 = vmatprep.mubr.f32.mxu0 0.0
    %1774 = vmatmul.mubr.f32.gmra.mrb[0].mxu0 %v704
    %v1775 = vpop.f32.mrb[0].mxu0
    %v1776 = vadd.f32 %v648, %v1775
    %v1777 = vpop.f32.mrb[0].mxu0
    %1778 = vmatprep.mubr.f32.mxu0 0.0
    %1779 = vmatmul.mubr.f32.gmra.mrb[0].mxu0 %v707
    %v1780 = vpop.f32.mrb[0].mxu0
    %v1781 = vadd.f32 %v653, %v1780
    %v1782 = vpop.f32.mrb[0].mxu0
    %1783 = vmatprep.mubr.f32.mxu0 0.0
    %1784 = vmatmul.mubr.f32.gmra.mrb[0].mxu0 %v710
    %v1785 = vpop.f32.mrb[0].mxu0
    %v1786 = vadd.f32 %v658, %v1785
    %v1787 = vpop.f32.mrb[0].mxu0
    %1788 = vmatprep.mubr.f32.mxu0 0.0
    %1789 = vmatmul.mubr.f32.gmra.mrb[0].mxu0 %v713
    %v1790 = vpop.f32.mrb[0].mxu0
    %v1791 = vadd.f32 %v663, %v1790
    %v1792 = vpop.f32.mrb[0].mxu0
    %1793 = vmatprep.mubr.f32.mxu0 0.0
    %1794 = vmatmul.mubr.f32.gmra.mrb[0].mxu0 %v716
    %v1795 = vpop.f32.mrb[0].mxu0
    %v1796 = vadd.f32 %v668, %v1795
    %v1797 = vpop.f32.mrb[0].mxu0
    %1798 = vdwg.mxu0
    %1799 = vxpose.xlu0.b32.start [1/16] %v1616, 128
    %1800 = vxpose.xlu0.b32.cont [2/16] %v1621, 128
    %1801 = vxpose.xlu0.b32.cont [3/16] %v1626, 128
    %1802 = vxpose.xlu0.b32.cont [4/16] %v1631, 128
    %1803 = vxpose.xlu0.b32.cont [5/16] %v1636, 128
    %1804 = vxpose.xlu0.b32.cont [6/16] %v1641, 128
    %1805 = vxpose.xlu0.b32.cont [7/16] %v1646, 128
    %1806 = vxpose.xlu0.b32.cont [8/16] %v1651, 128
    %1807 = vxpose.xlu0.b32.cont [9/16] 0.0, 128
    %1808 = vxpose.xlu0.b32.cont [10/16] 0.0, 128
    %1809 = vxpose.xlu0.b32.cont [11/16] 0.0, 128
    %1810 = vxpose.xlu0.b32.cont [12/16] 0.0, 128
    %1811 = vxpose.xlu0.b32.cont [13/16] 0.0, 128
    %1812 = vxpose.xlu0.b32.cont [14/16] 0.0, 128
    %1813 = vxpose.xlu0.b32.cont [15/16] 0.0, 128
    %1814 = vxpose.xlu0.b32.end [16/16] 0.0, 128
    %v1815 = vpop.trf.xlu0
    %v1816 = vpop.trf.xlu0
    %v1817 = vpop.trf.xlu0
    %v1818 = vpop.trf.xlu0
    %v1819 = vpop.trf.xlu0
    %v1820 = vpop.trf.xlu0
    %v1821 = vpop.trf.xlu0
    %v1822 = vpop.trf.xlu0
    %v1823 = vpop.trf.xlu0
    %v1824 = vpop.trf.xlu0
    %v1825 = vpop.trf.xlu0
    %v1826 = vpop.trf.xlu0
    %v1827 = vpop.trf.xlu0
    %v1828 = vpop.trf.xlu0
    %v1829 = vpop.trf.xlu0
    %v1830 = vpop.trf.xlu0
    %v1832 = vsel %vm460, %v1815, 0
    %v1835 = vsel %vm460, %v1816, 0
    %1837 = vmatprep.subr.mxu0 0.0
    %1838 = vmatpush1.msra.mxu0 %v1721
    %1839 = vmatprep.subr.mxu0 0.0
    %1840 = vmatpush1.msra.mxu0 %v1726
    %1841 = vmatprep.subr.mxu0 0.0
    %1842 = vmatpush1.msra.mxu0 %v1731
    %1843 = vmatprep.subr.mxu0 0.0
    %1844 = vmatpush1.msra.mxu0 %v1736
    %1845 = vmatprep.subr.mxu0 0.0
    %1846 = vmatpush1.msra.mxu0 %v1741
    %1847 = vmatprep.subr.mxu0 0.0
    %1848 = vmatpush1.msra.mxu0 %v1746
    %1849 = vmatprep.subr.mxu0 0.0
    %1850 = vmatpush1.msra.mxu0 %v1751
    %1851 = vmatprep.subr.mxu0 0.0
    %1852 = vmatpush1.msra.mxu0 %v1756
    %1853 = vmatprep.subr.mxu0 0.0
    %1854 = vmatpush1.msra.mxu0 0.0
    %1855 = vmatprep.subr.mxu0 0.0
    %1856 = vmatpush1.msra.mxu0 0.0
    %1857 = vmatprep.subr.mxu0 0.0
    %1858 = vmatpush1.msra.mxu0 0.0
    %1859 = vmatprep.subr.mxu0 0.0
    %1860 = vmatpush1.msra.mxu0 0.0
    %1861 = vmatprep.subr.mxu0 0.0
    %1862 = vmatpush1.msra.mxu0 0.0
    %1863 = vmatprep.subr.mxu0 0.0
    %1864 = vmatpush1.msra.mxu0 0.0
    %1865 = vmatprep.subr.mxu0 0.0
    %1866 = vmatpush1.msra.mxu0 0.0
    %1867 = vmatprep.subr.mxu0 0.0
    %1868 = vmatpush1.msra.mxu0 0.0
    %1869 = vmatprep.subr.mxu0 0.0
    %1870 = vmatpush1.msra.mxu0 0.0
    %1871 = vmatprep.subr.mxu0 0.0
    %1872 = vmatpush1.msra.mxu0 0.0
    %1873 = vmatprep.subr.mxu0 0.0
    %1874 = vmatpush1.msra.mxu0 0.0
    %1875 = vmatprep.subr.mxu0 0.0
    %1876 = vmatpush1.msra.mxu0 0.0
    %1877 = vmatprep.subr.mxu0 0.0
    %1878 = vmatpush1.msra.mxu0 0.0
    %1879 = vmatprep.subr.mxu0 0.0
    %1880 = vmatpush1.msra.mxu0 0.0
    %1881 = vmatprep.subr.mxu0 0.0
    %1882 = vmatpush1.msra.mxu0 0.0
    %1883 = vmatprep.subr.mxu0 0.0
    %1884 = vmatpush1.msra.mxu0 0.0
    %1885 = vmatprep.subr.mxu0 0.0
    %1886 = vmatpush1.msra.mxu0 0.0
    %1887 = vmatprep.subr.mxu0 0.0
    %1888 = vmatpush1.msra.mxu0 0.0
    %1889 = vmatprep.subr.mxu0 0.0
    %1890 = vmatpush1.msra.mxu0 0.0
    %1891 = vmatprep.subr.mxu0 0.0
    %1892 = vmatpush1.msra.mxu0 0.0
    %1893 = vmatprep.subr.mxu0 0.0
    %1894 = vmatpush1.msra.mxu0 0.0
    %1895 = vmatprep.subr.mxu0 0.0
    %1896 = vmatpush1.msra.mxu0 0.0
    %1897 = vmatprep.subr.mxu0 0.0
    %1898 = vmatpush1.msra.mxu0 0.0
    %1899 = vmatprep.subr.mxu0 0.0
    %1900 = vmatpush1.msra.mxu0 0.0
    %1901 = vmatprep.mubr.f32.mxu0 0.0
    %1902 = vmatmul.mubr.f32.gmra.mrb[0].mxu0 %v1832
    %v1903 = vpop.f32.mrb[0].mxu0
    %v1904 = vadd.f32 0.0, %v1903
    %v1905 = vpop.f32.mrb[0].mxu0
    %1906 = vmatprep.mubr.f32.mxu0 0.0
    %1907 = vmatmul.mubr.f32.gmra.mrb[0].mxu0 %v1835
    %v1908 = vpop.f32.mrb[0].mxu0
    %v1909 = vadd.f32 0.0, %v1908
    %v1910 = vpop.f32.mrb[0].mxu0
    %1911 = vdwg.mxu0
    %v1912 = vsel %vm976, %v1904, -inf
    %1913 = vmax.xlane.f32.xlu0 %v1912
    %v1914 = vpop.xlane.xlu0 %1913
    %v1915 = vsel %vm976, %v1909, -inf
    %1916 = vmax.xlane.f32.xlu0 %v1915
    %v1917 = vpop.xlane.xlu0 %1916
    %v1918 = vsub.f32 %v1904, %v1914
    %v1919 = vsub.f32 %v1909, %v1917
    %v1920 = vmul.f32 %v1918, 1.442695
    %v1921 = vpow.pop %v1920
    %v1922 = vmul.f32 %v1919, 1.442695
    %v1923 = vpow.pop %v1922
    %v1924 = vsel %vm976, %v1921, 0.0
    %1925 = vadd.xlane.f32.xlu0 %v1924
    %v1926 = vpop.xlane.xlu0 %1925
    %v1927 = vsel %vm976, %v1923, 0.0
    %1928 = vadd.xlane.f32.xlu0 %v1927
    %v1929 = vpop.xlane.xlu0 %1928
    %v1930 = vrcp.pop %v1926
    %v1931 = vmul.f32 %v1921, %v1930
    %v1932 = vrcp.pop %v1929
    %v1933 = vmul.f32 %v1923, %v1932
    %v1936 = vrot.slane %v1931, 1
    %v1937 = vrot.slane %v1931, 2
    %v1938 = vrot.slane %v1931, 3
    %v1939 = vrot.slane %v1931, 4
    %v1940 = vrot.slane %v1931, 5
    %v1941 = vrot.slane %v1931, 6
    %v1942 = vrot.slane %v1931, 7
    %v1943 = vrot.slane %v1933, 1
    %v1944 = vrot.slane %v1933, 2
    %v1945 = vrot.slane %v1933, 3
    %v1946 = vrot.slane %v1933, 4
    %v1947 = vrot.slane %v1933, 5
    %v1948 = vrot.slane %v1933, 6
    %v1949 = vrot.slane %v1933, 7
    %v1966 = vmul.f32 %v1518, %v1931
    %v1967 = vmul.f32 %v1520, %v1936
    %v1968 = vmul.f32 %v1522, %v1937
    %v1969 = vmul.f32 %v1524, %v1938
    %v1970 = vmul.f32 %v1526, %v1939
    %v1971 = vmul.f32 %v1528, %v1940
    %v1972 = vmul.f32 %v1530, %v1941
    %v1973 = vmul.f32 %v1532, %v1942
    %v1974 = vmul.f32 %v1534, %v1933
    %v1975 = vmul.f32 %v1536, %v1943
    %v1976 = vmul.f32 %v1538, %v1944
    %v1977 = vmul.f32 %v1540, %v1945
    %v1978 = vmul.f32 %v1542, %v1946
    %v1979 = vmul.f32 %v1544, %v1947
    %v1980 = vmul.f32 %v1546, %v1948
    %v1981 = vmul.f32 %v1548, %v1949
    %v1998 = vrot.slane %v1967, 7
    %v1999 = vsel %vm1064, %v1998, %v1966
    %v2000 = vrot.slane %v1968, 6
    %v2001 = vsel %vm1067, %v2000, %v1999
    %v2002 = vrot.slane %v1969, 5
    %v2003 = vsel %vm1070, %v2002, %v2001
    %v2004 = vrot.slane %v1970, 4
    %v2005 = vsel %vm1073, %v2004, %v2003
    %v2006 = vrot.slane %v1971, 3
    %v2007 = vsel %vm1076, %v2006, %v2005
    %v2008 = vrot.slane %v1972, 2
    %v2009 = vsel %vm1079, %v2008, %v2007
    %v2010 = vrot.slane %v1973, 1
    %v2011 = vsel %vm1082, %v2010, %v2009
    %v2012 = vrot.slane %v1975, 7
    %v2013 = vsel %vm1064, %v2012, %v1974
    %v2014 = vrot.slane %v1976, 6
    %v2015 = vsel %vm1067, %v2014, %v2013
    %v2016 = vrot.slane %v1977, 5
    %v2017 = vsel %vm1070, %v2016, %v2015
    %v2018 = vrot.slane %v1978, 4
    %v2019 = vsel %vm1073, %v2018, %v2017
    %v2020 = vrot.slane %v1979, 3
    %v2021 = vsel %vm1076, %v2020, %v2019
    %v2022 = vrot.slane %v1980, 2
    %v2023 = vsel %vm1079, %v2022, %v2021
    %v2024 = vrot.slane %v1981, 1
    %v2025 = vsel %vm1082, %v2024, %v2023
    %v2026 = vsel %vm976, %v2011, 0
    %v2028 = vsel %vm976, %v2025, 0
    %v2031 = vsel %vm976, %v1761, 0
    %v2034 = vsel %vm976, %v1766, 0
    %v2037 = vsel %vm976, %v1771, 0
    %v2040 = vsel %vm976, %v1776, 0
    %v2043 = vsel %vm976, %v1781, 0
    %v2046 = vsel %vm976, %v1786, 0
    %v2049 = vsel %vm976, %v1791, 0
    %v2052 = vsel %vm976, %v1796, 0
    %2054 = vmatprep.subr.mxu0 0.0
    %2055 = vmatpush1.xpose.msra.mxu0 %v2031
    %2056 = vmatprep.subr.mxu0 0.0
    %2057 = vmatpush1.xpose.msra.mxu0 %v2034
    %2058 = vmatprep.subr.mxu0 0.0
    %2059 = vmatpush1.xpose.msra.mxu0 %v2037
    %2060 = vmatprep.subr.mxu0 0.0
    %2061 = vmatpush1.xpose.msra.mxu0 %v2040
    %2062 = vmatprep.subr.mxu0 0.0
    %2063 = vmatpush1.xpose.msra.mxu0 %v2043
    %2064 = vmatprep.subr.mxu0 0.0
    %2065 = vmatpush1.xpose.msra.mxu0 %v2046
    %2066 = vmatprep.subr.mxu0 0.0
    %2067 = vmatpush1.xpose.msra.mxu0 %v2049
    %2068 = vmatprep.subr.mxu0 0.0
    %2069 = vmatpush1.xpose.msra.mxu0 %v2052
    %2070 = vmatprep.subr.mxu0 0.0
    %2071 = vmatpush1.xpose.msra.mxu0 0.0
    %2072 = vmatprep.subr.mxu0 0.0
    %2073 = vmatpush1.xpose.msra.mxu0 0.0
    %2074 = vmatprep.subr.mxu0 0.0
    %2075 = vmatpush1.xpose.msra.mxu0 0.0
    %2076 = vmatprep.subr.mxu0 0.0
    %2077 = vmatpush1.xpose.msra.mxu0 0.0
    %2078 = vmatprep.subr.mxu0 0.0
    %2079 = vmatpush1.xpose.msra.mxu0 0.0
    %2080 = vmatprep.subr.mxu0 0.0
    %2081 = vmatpush1.xpose.msra.mxu0 0.0
    %2082 = vmatprep.subr.mxu0 0.0
    %2083 = vmatpush1.xpose.msra.mxu0 0.0
    %2084 = vmatprep.subr.mxu0 0.0
    %2085 = vmatpush1.xpose.msra.mxu0 0.0
    %2086 = vmatprep.subr.mxu0 0.0
    %2087 = vmatpush1.xpose.msra.mxu0 0.0
    %2088 = vmatprep.subr.mxu0 0.0
    %2089 = vmatpush1.xpose.msra.mxu0 0.0
    %2090 = vmatprep.subr.mxu0 0.0
    %2091 = vmatpush1.xpose.msra.mxu0 0.0
    %2092 = vmatprep.subr.mxu0 0.0
    %2093 = vmatpush1.xpose.msra.mxu0 0.0
    %2094 = vmatprep.subr.mxu0 0.0
    %2095 = vmatpush1.xpose.msra.mxu0 0.0
    %2096 = vmatprep.subr.mxu0 0.0
    %2097 = vmatpush1.xpose.msra.mxu0 0.0
    %2098 = vmatprep.subr.mxu0 0.0
    %2099 = vmatpush1.xpose.msra.mxu0 0.0
    %2100 = vmatprep.subr.mxu0 0.0
    %2101 = vmatpush1.xpose.msra.mxu0 0.0
    %2102 = vmatprep.subr.mxu0 0.0
    %2103 = vmatpush1.xpose.msra.mxu0 0.0
    %2104 = vmatprep.subr.mxu0 0.0
    %2105 = vmatpush1.xpose.msra.mxu0 0.0
    %2106 = vmatprep.subr.mxu0 0.0
    %2107 = vmatpush1.xpose.msra.mxu0 0.0
    %2108 = vmatprep.subr.mxu0 0.0
    %2109 = vmatpush1.xpose.msra.mxu0 0.0
    %2110 = vmatprep.subr.mxu0 0.0
    %2111 = vmatpush1.xpose.msra.mxu0 0.0
    %2112 = vmatprep.subr.mxu0 0.0
    %2113 = vmatpush1.xpose.msra.mxu0 0.0
    %2114 = vmatprep.subr.mxu0 0.0
    %2115 = vmatpush1.xpose.msra.mxu0 0.0
    %2116 = vmatprep.subr.mxu0 0.0
    %2117 = vmatpush1.xpose.msra.mxu0 0.0
    %2118 = vmatprep.mubr.f32.mxu0 0.0
    %2119 = vmatmul.mubr.f32.gmra.mrb[0].mxu0 %v2026
    %v2120 = vpop.f32.mrb[0].mxu0
    %v2121 = vadd.f32 0.0, %v2120
    %v2122 = vpop.f32.mrb[0].mxu0
    %2123 = vmatprep.mubr.f32.mxu0 0.0
    %2124 = vmatmul.mubr.f32.gmra.mrb[0].mxu0 %v2028
    %v2125 = vpop.f32.mrb[0].mxu0
    %v2126 = vadd.f32 0.0, %v2125
    %v2127 = vpop.f32.mrb[0].mxu0
    %2128 = vdwg.mxu0
    %v2129 = vmul.f32 %v1201, %v2121
    %v2130 = vmul.f32 %v1201, %v2126
    %s2131 = scalar_lea.vmem %s3, 16
    %v2132 = vld [vmem:[%s2131] sm:$0xff]
    %v2133 = vld [vmem:[%s2131 + $0x8] sm:$0xff]
    %v2134 = vadd.f32 %v2129, %v2132
    %v2135 = vadd.f32 %v2130, %v2133
    %s2136 = scalar_lea.vmem [#allocation3], 16
    %2137 = vst.msk [vmem:[%s2136] sm:$0xff] %vm460, %v2134
    %2138 = vst.msk [vmem:[%s2136 + $0x8] sm:$0xff] %vm460, %v2135
    // Predicated region
    $region38: #{tpu_custom_call.1} parent=1 // pred_check
      _
    $region39: #{tpu_custom_call.1} parent=1 // pred_check_branch
      %2140 = sbr.rel (0) target = $region41
    $region40: #{tpu_custom_call.1} parent=1 // pred_region
      %s2142 = ssub.s32 512, 512
      %2143 = vsyncadd [#allocation4], %s2142
      %s2144 = sshll.u32 [#allocation3], 4
      %s2145 = int_to_ptr.vmem [resolvable:$true] %s2144
      %2150 = dma.vmem_to_hbm [thread:$0]  %s2145, 512, %s9, [#allocation4], 128, 128, 8
    $region41: #{tpu_custom_call.1} parent=1 // pred_fallthru
      _
    // Predicated region
    $region42: #{tpu_custom_call.1} parent=1 // pred_check
      _
    $region43: #{tpu_custom_call.1} parent=1 // pred_check_branch
      %2152 = sbr.rel (0) target = $region45
    $region44: #{tpu_custom_call.1} parent=1 // pred_region
      %2153 = dma.done [#allocation4], 512
    $region45: #{tpu_custom_call.1} parent=1 // pred_fallthru
      _
    %2154 = vsyncpa [#allocation4], 1

</llo_original>
